<compile_context>
chip_gen: v6e
topology: v6e:2x2x1
jax: 0.10.0
libtpu: 0.0.40
codegen_flags: <defaults>
</compile_context>

<pallas_src>
import functools

import jax
import jax.numpy as jnp
import numpy as np
from jax import lax
from jax.experimental import pallas as pl
from jax.experimental.pallas import tpu as pltpu


# ----------------------------------------------------------------------------- kernels


def _centers_kernel(x_ref, tcol_ref, trow_ref, centers_ref, csq_ref,
                    acc_ref, cnt_ref, *, use_bf16):
    """Stage 1: per-sample class centers, contraction tiled over sample columns.

    centers[i] = (1/|class(i)|) * sum_j [label(j) == label(i)] * x[j], accumulated
    across the inner grid axis in f32 VMEM scratch; ||centers||^2 emitted too.
    """
    k = pl.program_id(1)

    @pl.when(k == 0)
    def _():
        acc_ref[...] = jnp.zeros_like(acc_ref)
        cnt_ref[...] = jnp.zeros_like(cnt_ref)

    sim = tcol_ref[...] == trow_ref[...]                 # (bt, bk) bool
    simf = jnp.where(sim, 1.0, 0.0)                      # f32 0/1 (safe mask -> float)
    cnt_ref[...] += jnp.sum(simf, axis=1, keepdims=True)
    operand = simf.astype(jnp.bfloat16) if use_bf16 else simf
    acc_ref[...] += jnp.dot(operand, x_ref[...],
                            preferred_element_type=jnp.float32)

    @pl.when(k == pl.num_programs(1) - 1)
    def _():
        # counts >= 1 always (every row matches itself), so the divide is safe.
        centers = acc_ref[...] * (1.0 / cnt_ref[...])    # (bt, Dp) f32
        csq_ref[...] = jnp.sum(centers * centers, axis=1, keepdims=True)
        centers_ref[...] = centers.astype(centers_ref.dtype)


def _loss_kernel(x_ref, cown_ref, ccol_ref, csq_ref, tcol_ref, trow_ref, out_ref,
                 xsq_ref, an2_ref, *, margin, square, soft, use_bf16):
    """Stage 2: distances to center column tiles, running hardest-negative min,
    hardest positive from the row's own center, per-row loss at the last tile."""
    j = pl.program_id(1)

    x = x_ref[...]                                       # (bt, Dp) f32 row tile
    t_col = tcol_ref[...]                                # (bt, 1)  i32
    t_row = trow_ref[...]                                # (1, bc)  i32

    @pl.when(j == 0)
    def _():
        xsq_ref[...] = jnp.sum(x * x, axis=1, keepdims=True)
        an2_ref[...] = jnp.full_like(an2_ref, 1e30)

    # ||x_i - c_j||^2 via transposed-B MXU contraction over D (clamped at 0).
    c_col = ccol_ref[...]                                # (bc, Dp) bf16/f32
    x_mm = x.astype(jnp.bfloat16) if use_bf16 else x
    xc = lax.dot_general(x_mm, c_col, (((1,), (1,)), ((), ())),
                         preferred_element_type=jnp.float32)        # (bt, bc)
    d2 = jnp.maximum(xsq_ref[...] + csq_ref[...] - 2.0 * xc, 0.0)   # (bt, bc)

    # Hardest negative over this column tile (padded columns have label -1).
    sim = t_col == t_row
    neg_mask = jnp.logical_and(jnp.logical_not(sim), t_row >= 0)
    an_tile = jnp.min(jnp.where(neg_mask, d2, 1e30), axis=1, keepdims=True)
    an2_ref[...] = jnp.minimum(an2_ref[...], an_tile)

    @pl.when(j == pl.num_programs(1) - 1)
    def _():
        # Hardest positive: every positive column shares this row's own center.
        c_own = cown_ref[...].astype(jnp.float32)        # (bt, Dp)
        diff = x - c_own
        ap2 = jnp.sum(diff * diff, axis=1, keepdims=True)            # (bt, 1)
        an2 = an2_ref[...]

        if square:
            dist_ap, dist_an = ap2, an2
        else:
            dist_ap = jnp.sqrt(jnp.maximum(ap2, 1e-12))
            dist_an = jnp.sqrt(jnp.maximum(an2, 1e-12))

        if soft:
            m = jnp.maximum(dist_ap, dist_an)
            lse = m + jnp.log(jnp.exp(dist_ap - m) + jnp.exp(dist_an - m))
            per_row = -margin * (dist_ap - lse) - (1.0 - margin) * (dist_an - lse)
        else:
            per_row = jnp.maximum(dist_ap - dist_an + margin, 0.0)

        row_valid = jnp.where(t_col >= 0, 1.0, 0.0)      # padded rows contribute 0
        out_ref[...] = per_row * row_valid


# ----------------------------------------------------------------------------- wrapper


def _round_up(v, m):
    return ((v + m - 1) // m) * m


def _tpu_defaults():
    """(block_rows, vmem_limit_bytes) chosen per TPU generation (best effort)."""
    kind = ""
    try:
        kind = jax.devices()[0].device_kind.lower()
    except Exception:
        pass
    # v5e MXU is 128-wide in M; 256 rows only bloats intermediates there.
    block_rows = 128 if ("v5 lite" in kind or "v5e" in kind) else 256
    try:
        vmem = int(pltpu.get_tpu_info().vmem_capacity_bytes)
    except Exception:
        vmem = (64 if "v7" in kind else 128) * 1024 * 1024
    vmem_limit = min(int(vmem * 0.8), 100 * 1024 * 1024)
    return block_rows, vmem_limit


def center_triplet_loss(features, targets, *, margin=0.0, square=False, soft=False,
                        use_bf16=True, block_rows=None, block_cols=1024):
    """CenterTripletLoss forward.  features: (N, D) float, targets: (N,) int."""
    n, d = features.shape
    rows_default, vmem_limit = _tpu_defaults()
    bt = int(block_rows) if block_rows is not None else rows_default
    assert bt % 128 == 0, "block_rows must be a multiple of 128 (lane-dense)"

    d_pad = _round_up(d, 128)
    cbytes = 2 if use_bf16 else 4

    # Column / contraction tile: multiple of bt, capped by padded N and a VMEM budget.
    bc = max(bt, (int(block_cols) // bt) * bt)
    bc = min(bc, _round_up(n, bt))
    while bc > bt and bc * d_pad * cbytes > 8 * 1024 * 1024:
        bc = max(bt, ((bc // 2) // bt) * bt)

    n_pad = _round_up(n, bc)           # multiple of both bt and bc
    n_row_tiles = n_pad // bt
    n_col_tiles = n_pad // bc

    # Pad to lane-dense shapes; padded rows/columns get label -1 and are masked out.
    x = jnp.zeros((n_pad, d_pad), jnp.float32).at[:n, :d].set(
        jnp.asarray(features, jnp.float32))
    t = jnp.full((n_pad,), -1, jnp.int32).at[:n].set(jnp.asarray(targets, jnp.int32))
    t_col = t.reshape(n_pad, 1)
    t_row = t.reshape(1, n_pad)

    # bf16 MXU operands: cast x once here (stage 1), emit centers directly as bf16.
    x_s1 = x.astype(jnp.bfloat16) if use_bf16 else x
    centers_dtype = jnp.bfloat16 if use_bf16 else jnp.float32

    cparams = pltpu.CompilerParams(
        dimension_semantics=("parallel", "arbitrary"),
        vmem_limit_bytes=vmem_limit)

    # ---- Stage 1: per-sample class centers (+ squared norms), contraction tiled.
    centers, c_sq = pl.pallas_call(
        functools.partial(_centers_kernel, use_bf16=use_bf16),
        out_shape=(jax.ShapeDtypeStruct((n_pad, d_pad), centers_dtype),
                   jax.ShapeDtypeStruct((n_pad, 1), jnp.float32)),
        grid=(n_row_tiles, n_col_tiles),
        in_specs=[
            pl.BlockSpec((bc, d_pad), lambda i, k: (k, 0)),            # x sample tile
            pl.BlockSpec((bt, 1), lambda i, k: (i, 0),
                         pipeline_mode=pl.Buffered(1)),                # tile labels
            pl.BlockSpec((1, bc), lambda i, k: (0, k)),                # column labels
        ],
        out_specs=(pl.BlockSpec((bt, d_pad), lambda i, k: (i, 0)),
                   pl.BlockSpec((bt, 1), lambda i, k: (i, 0))),
        scratch_shapes=[pltpu.VMEM((bt, d_pad), jnp.float32),          # center sums
                        pltpu.VMEM((bt, 1), jnp.float32)],             # class counts
        compiler_params=cparams,
        cost_estimate=pl.CostEstimate(
            flops=2 * n_pad * n_pad * d_pad + 2 * n_pad * d_pad,
            transcendentals=0,
            bytes_accessed=(cbytes * n_pad * d_pad * n_row_tiles
                            + cbytes * n_pad * d_pad + 12 * n_pad)),
    )(x_s1, t_col, t_row)

    # ---- Stage 2: distances + batch-hard + per-row loss, centers column-tiled.
    per_row = pl.pallas_call(
        functools.partial(_loss_kernel, margin=float(margin), square=bool(square),
                          soft=bool(soft), use_bf16=use_bf16),
        out_shape=jax.ShapeDtypeStruct((n_pad, 1), jnp.float32),
        grid=(n_row_tiles, n_col_tiles),
        in_specs=[
            pl.BlockSpec((bt, d_pad), lambda i, j: (i, 0)),            # x row tile (f32)
            pl.BlockSpec((bt, d_pad), lambda i, j: (i, 0),
                         pipeline_mode=pl.Buffered(1)),                # own centers
            pl.BlockSpec((bc, d_pad), lambda i, j: (j, 0)),            # centers column tile
            pl.BlockSpec((1, bc), lambda i, j: (0, j)),                # ||c_j||^2
            pl.BlockSpec((bt, 1), lambda i, j: (i, 0),
                         pipeline_mode=pl.Buffered(1)),                # tile labels
            pl.BlockSpec((1, bc), lambda i, j: (0, j)),                # column labels
        ],
        out_specs=pl.BlockSpec((bt, 1), lambda i, j: (i, 0)),
        scratch_shapes=[pltpu.VMEM((bt, 1), jnp.float32),              # ||x_i||^2
                        pltpu.VMEM((bt, 1), jnp.float32)],             # running an^2
        compiler_params=cparams,
        cost_estimate=pl.CostEstimate(
            flops=2 * n_pad * n_pad * d_pad + 8 * n_pad * n_pad,
            transcendentals=4 * n_pad,
            bytes_accessed=(cbytes * n_pad * d_pad * n_row_tiles      # centers col tiles
                            + 4 * n_pad * d_pad                        # x row tiles
                            + cbytes * n_pad * d_pad                   # own centers
                            + 4 * n_pad * (n_row_tiles + 3))),
    )(x, centers, centers, c_sq.reshape(1, n_pad), t_col, t_row)

    # Final mean over the real N rows (padded rows were zeroed in-kernel).
    return jnp.sum(per_row) / n


# ----------------------------------------------------------------------------- reference


def _reference_loss(features, targets, *, margin=0.0, square=False, soft=False):
    """Pure-JAX reference mirroring the PyTorch module."""
    x = jnp.asarray(features, jnp.float32)
    t = jnp.asarray(targets, jnp.int32)
    sim = (t[:, None] == t[None, :]).astype(jnp.float32)
    counts = jnp.sum(sim, axis=1, keepdims=True)
    centers = (sim @ x) / counts
    d2 = jnp.sum((x[:, None, :] - centers[None, :, :]) ** 2, axis=-1)
    dist = d2 if square else jnp.sqrt(jnp.maximum(d2, 1e-12))
    dist_ap = jnp.max(dist + (-9999999.0) * (1.0 - sim), axis=1)
    dist_an = jnp.min(dist + 9999999.0 * sim, axis=1)
    if soft:
        td = jnp.stack([dist_ap, dist_an], axis=1)
        ls = jax.nn.log_softmax(td, axis=1)
        return jnp.mean(-margin * ls[:, 0] - (1.0 - margin) * ls[:, 1])
    return jnp.mean(jnp.maximum(dist_ap - dist_an + margin, 0.0))


# ----------------------------------------------------------------------------- test


if __name__ == "__main__":
    key = jax.random.PRNGKey(0)
    N, D = 8, 32
    features = jax.random.normal(key, (N, D), dtype=jnp.float32)
    targets = jnp.array([0, 0, 1, 1, 2, 2, 0, 1], dtype=jnp.int32)

    # f32 MXU-operand paths, tight tolerance: hard-margin, squared, soft log-softmax.
    configs = [
        dict(margin=0.0, square=False, soft=False),
        dict(margin=0.5, square=True, soft=False),
        dict(margin=0.3, square=False, soft=True),
    ]
    for cfg in configs:
        got = jax.block_until_ready(
            center_triplet_loss(features, targets, use_bf16=False, **cfg))
        ref = jax.block_until_ready(_reference_loss(features, targets, **cfg))
        np.testing.assert_allclose(np.asarray(got), np.asarray(ref),
                                   rtol=1e-3, atol=1e-3)

    # Multi-tile path (several row AND column tiles) to exercise the accumulators.
    k1, k2 = jax.random.split(jax.random.PRNGKey(0))
    N2, D2 = 300, 40
    feats2 = jax.random.normal(k1, (N2, D2), dtype=jnp.float32)
    tgts2 = jax.random.randint(k2, (N2,), 0, 7, dtype=jnp.int32)
    got2 = jax.block_until_ready(
        center_triplet_loss(feats2, tgts2, use_bf16=False,
                            block_rows=128, block_cols=128))
    ref2 = jax.block_until_ready(_reference_loss(feats2, tgts2))
    np.testing.assert_allclose(np.asarray(got2), np.asarray(ref2),
                               rtol=1e-3, atol=1e-3)

    # Default path (bf16 MXU operands, f32 accumulation): loose check since the
    # class centers are bf16-perturbed.
    got_bf16 = jax.block_until_ready(center_triplet_loss(features, targets))
    ref = jax.block_until_ready(_reference_loss(features, targets))
    np.testing.assert_allclose(np.asarray(got_bf16), np.asarray(ref),
                               rtol=1e-1, atol=1e-1)

    print("KERNEL_OK")
</pallas_src>

<mosaic_0001>
module attributes {stable_mosaic.version = 11 : i64} {
  func.func @_centers_kernel(%arg0: i32, %arg1: i32, %arg2: memref<256x128xf32, #tpu.memory_space<vmem>>, %arg3: memref<256x1xi32, #tpu.memory_space<vmem>>, %arg4: memref<1x256xi32, #tpu.memory_space<vmem>>, %arg5: memref<256x128xf32, #tpu.memory_space<vmem>>, %arg6: memref<256x1xf32, #tpu.memory_space<vmem>>, %arg7: memref<256x128xf32, #tpu.memory_space<vmem>>, %arg8: memref<256x1xf32, #tpu.memory_space<vmem>>) attributes {dimension_semantics = [#tpu.dimension_semantics<parallel>, #tpu.dimension_semantics<arbitrary>], iteration_bounds = array<i64: 1, 1>, scalar_prefetch = 0 : i64, scratch_operands = 2 : i64, tpu.core_type = #tpu.core_type<tc>, window_params = [{transform_indices = @transform_0, window_bounds = array<i64: 256, 128>}, {pipeline_mode = #tpu.pipeline_mode<synchronous>, transform_indices = @transform_1, window_bounds = array<i64: 256, 1>}, {transform_indices = @transform_2, window_bounds = array<i64: 1, 256>}, {transform_indices = @transform_3, window_bounds = array<i64: 256, 128>}, {transform_indices = @transform_4, window_bounds = array<i64: 256, 1>}]} {
    %c0_i32 = arith.constant 0 : i32
    %0 = arith.cmpi eq, %arg1, %c0_i32 : i32
    %1 = arith.extui %0 : i1 to i32
    %c0_i32_0 = arith.constant 0 : i32
    %2 = arith.cmpi ne, %1, %c0_i32_0 : i32
    scf.if %2 {
      %cst_19 = arith.constant 0.000000e+00 : f32
      %24 = vector.broadcast %cst_19 : f32 to vector<256x128xf32>
      %c0_20 = arith.constant 0 : index
      %c0_21 = arith.constant 0 : index
      %25 = vector.load %arg7[%c0_20, %c0_21] : memref<256x128xf32, #tpu.memory_space<vmem>>, vector<256x128xf32>
      tpu.vector_store %arg7[%c0_20, %c0_21], %24 {strides = array<i32>} : memref<256x128xf32, #tpu.memory_space<vmem>>, vector<256x128xf32>,
      %cst_22 = arith.constant 0.000000e+00 : f32
      %26 = vector.broadcast %cst_22 : f32 to vector<256x1xf32>
      %c0_23 = arith.constant 0 : index
      %c0_24 = arith.constant 0 : index
      %27 = vector.load %arg8[%c0_23, %c0_24] : memref<256x1xf32, #tpu.memory_space<vmem>>, vector<256x1xf32>
      tpu.vector_store %arg8[%c0_23, %c0_24], %26 {strides = array<i32>} : memref<256x1xf32, #tpu.memory_space<vmem>>, vector<256x1xf32>,
    } else {
    }
    %c0 = arith.constant 0 : index
    %c0_1 = arith.constant 0 : index
    %3 = vector.load %arg3[%c0, %c0_1] : memref<256x1xi32, #tpu.memory_space<vmem>>, vector<256x1xi32>
    %c0_2 = arith.constant 0 : index
    %c0_3 = arith.constant 0 : index
    %4 = vector.load %arg4[%c0_2, %c0_3] : memref<1x256xi32, #tpu.memory_space<vmem>>, vector<1x256xi32>
    %5 = vector.broadcast %3 : vector<256x1xi32> to vector<256x256xi32>
    %6 = vector.broadcast %4 : vector<1x256xi32> to vector<256x256xi32>
    %7 = arith.cmpi eq, %5, %6 : vector<256x256xi32>
    %cst = arith.constant 1.000000e+00 : f32
    %cst_4 = arith.constant 0.000000e+00 : f32
    %8 = vector.broadcast %cst : f32 to vector<256x256xf32>
    %9 = vector.broadcast %cst_4 : f32 to vector<256x256xf32>
    %10 = arith.select %7, %8, %9 : vector<256x256xi1>, vector<256x256xf32>
    %c0_5 = arith.constant 0 : index
    %c0_6 = arith.constant 0 : index
    %11 = vector.load %arg8[%c0_5, %c0_6] : memref<256x1xf32, #tpu.memory_space<vmem>>, vector<256x1xf32>
    %cst_7 = arith.constant dense<0.000000e+00> : vector<256xf32>
    %12 = vector.multi_reduction <add>, %10, %cst_7 [1] : vector<256x256xf32> to vector<256xf32>
    %13 = vector.shape_cast %12 : vector<256xf32> to vector<256x1xf32>
    %14 = arith.addf %11, %13 : vector<256x1xf32>
    %c0_8 = arith.constant 0 : index
    %c0_9 = arith.constant 0 : index
    %15 = vector.load %arg8[%c0_8, %c0_9] : memref<256x1xf32, #tpu.memory_space<vmem>>, vector<256x1xf32>
    tpu.vector_store %arg8[%c0_8, %c0_9], %14 {strides = array<i32>} : memref<256x1xf32, #tpu.memory_space<vmem>>, vector<256x1xf32>,
    %c0_10 = arith.constant 0 : index
    %c0_11 = arith.constant 0 : index
    %16 = vector.load %arg7[%c0_10, %c0_11] : memref<256x128xf32, #tpu.memory_space<vmem>>, vector<256x128xf32>
    %c0_12 = arith.constant 0 : index
    %c0_13 = arith.constant 0 : index
    %17 = vector.load %arg2[%c0_12, %c0_13] : memref<256x128xf32, #tpu.memory_space<vmem>>, vector<256x128xf32>
    %cst_14 = arith.constant dense<0.000000e+00> : vector<256x128xf32>
    %18 = tpu.matmul %10, %17, %cst_14 {dimension_numbers = #tpu.dot_dimension_numbers<[1], [0], [0], [1], [0, 0, 1, 1], [], []>} : vector<256x256xf32>, vector<256x128xf32>, vector<256x128xf32> -> vector<256x128xf32>
    %19 = arith.addf %16, %18 : vector<256x128xf32>
    %c0_15 = arith.constant 0 : index
    %c0_16 = arith.constant 0 : index
    %20 = vector.load %arg7[%c0_15, %c0_16] : memref<256x128xf32, #tpu.memory_space<vmem>>, vector<256x128xf32>
    tpu.vector_store %arg7[%c0_15, %c0_16], %19 {strides = array<i32>} : memref<256x128xf32, #tpu.memory_space<vmem>>, vector<256x128xf32>,
    %c0_i32_17 = arith.constant 0 : i32
    %21 = arith.cmpi eq, %arg1, %c0_i32_17 : i32
    %22 = arith.extui %21 : i1 to i32
    %c0_i32_18 = arith.constant 0 : i32
    %23 = arith.cmpi ne, %22, %c0_i32_18 : i32
    scf.if %23 {
      %c0_19 = arith.constant 0 : index
      %c0_20 = arith.constant 0 : index
      %24 = vector.load %arg7[%c0_19, %c0_20] : memref<256x128xf32, #tpu.memory_space<vmem>>, vector<256x128xf32>
      %c0_21 = arith.constant 0 : index
      %c0_22 = arith.constant 0 : index
      %25 = vector.load %arg8[%c0_21, %c0_22] : memref<256x1xf32, #tpu.memory_space<vmem>>, vector<256x1xf32>
      %cst_23 = arith.constant 1.000000e+00 : f32
      %26 = vector.broadcast %cst_23 : f32 to vector<256x1xf32>
      %27 = arith.divf %26, %25 : vector<256x1xf32>
      %28 = vector.broadcast %27 : vector<256x1xf32> to vector<256x128xf32>
      %29 = arith.mulf %24, %28 : vector<256x128xf32>
      %30 = arith.mulf %29, %29 : vector<256x128xf32>
      %cst_24 = arith.constant dense<0.000000e+00> : vector<256xf32>
      %31 = vector.multi_reduction <add>, %30, %cst_24 [1] : vector<256x128xf32> to vector<256xf32>
      %32 = vector.shape_cast %31 : vector<256xf32> to vector<256x1xf32>
      %c0_25 = arith.constant 0 : index
      %c0_26 = arith.constant 0 : index
      %33 = vector.load %arg6[%c0_25, %c0_26] : memref<256x1xf32, #tpu.memory_space<vmem>>, vector<256x1xf32>
      tpu.vector_store %arg6[%c0_25, %c0_26], %32 {strides = array<i32>} : memref<256x1xf32, #tpu.memory_space<vmem>>, vector<256x1xf32>,
      %c0_27 = arith.constant 0 : index
      %c0_28 = arith.constant 0 : index
      %34 = vector.load %arg5[%c0_27, %c0_28] : memref<256x128xf32, #tpu.memory_space<vmem>>, vector<256x128xf32>
      tpu.vector_store %arg5[%c0_27, %c0_28], %29 {strides = array<i32>} : memref<256x128xf32, #tpu.memory_space<vmem>>, vector<256x128xf32>,
    } else {
    }
    return
  }
  func.func @transform_0(%arg0: i32, %arg1: i32) -> (i32, i32) {
    %c0_i32 = arith.constant 0 : i32
    %c0_i32_0 = arith.constant 0 : i32
    return %arg1, %c0_i32 : i32, i32
  }
  func.func @transform_1(%arg0: i32, %arg1: i32) -> (i32, i32) {
    %c0_i32 = arith.constant 0 : i32
    %c0_i32_0 = arith.constant 0 : i32
    return %arg0, %c0_i32 : i32, i32
  }
  func.func @transform_2(%arg0: i32, %arg1: i32) -> (i32, i32) {
    %c0_i32 = arith.constant 0 : i32
    %c0_i32_0 = arith.constant 0 : i32
    return %c0_i32, %arg1 : i32, i32
  }
  func.func @transform_3(%arg0: i32, %arg1: i32) -> (i32, i32) {
    %c0_i32 = arith.constant 0 : i32
    %c0_i32_0 = arith.constant 0 : i32
    return %arg0, %c0_i32 : i32, i32
  }
  func.func @transform_4(%arg0: i32, %arg1: i32) -> (i32, i32) {
    %c0_i32 = arith.constant 0 : i32
    %c0_i32_0 = arith.constant 0 : i32
    return %arg0, %c0_i32 : i32, i32
  }
}

</mosaic_0001>

<llo_original>
// kernel: tpu_custom_call.1
$region0: #{tpu_custom_call.1}
  #allocation0 [shape = 'u32[]', space=smem, size = 0x4, offset = 0x4, fixed_abs, tag = 'smem constant byte address 0x4 - core index']
  #allocation1 [shape = 'u32[144,128]{1,0:T(1,128)}', space=vmem, size = 0x12000, scoped, tag = 'internal scratch']
  #allocation2 [shape = 'f32[256,128]{1,0:T(8,128)}', space=vmem, size = 0x20000, scoped, tag = 'scratch operand']
  #allocation3 [shape = 'f32[256,1]{1,0:T(8,128)}', space=vmem, size = 0x20000, scoped, tag = 'scratch operand']
  %s0 = inlined_call_operand.vmem [shape: f32[256,128], index: 0, kind: input, shape index: {}]
  %s1 = inlined_call_operand.vmem [shape: s32[256,1], index: 1, kind: input, shape index: {}]
  %s2 = inlined_call_operand.vmem [shape: s32[1,256], index: 2, kind: input, shape index: {}]
  %s3 = inlined_call_operand.hbm [shape: f32[256,128], index: 3, kind: output, shape index: {0}]
  %s4 = inlined_call_operand.vmem [shape: f32[256,1], index: 4, kind: output, shape index: {1}]
  %5 = xla_tuple %s3, %s4
  %s6 = sld [smem:[#allocation0]]
  $region38: #{tpu_custom_call.1} parent=0
    _
  %s8 = ssub.s32 1, %s6
  %s9 = scalar_select 0, %s8, %s6
  $region1: #{tpu_custom_call.1} parent=0
    #allocation4 [shape = 'u8[131072]{0}', space=vmem, size = 0x20000, scoped, tag = 'output window, operand 0, single buffered']
    #allocation5 [shape = 's32[1]{0}', space=sflag, size = 0x4, scoped, tag = 'scoped memory for tpu_custom_call.1']
    %10 = vsyncpa [#allocation5], 0
    // Predicated region
    $region2: #{tpu_custom_call.1} parent=1 // pred_check
      _
    $region3: #{tpu_custom_call.1} parent=1 // pred_check_branch
      %12 = sbr.rel (0) target = $region5
    $region4: #{tpu_custom_call.1} parent=1 // pred_region
      _
    $region5: #{tpu_custom_call.1} parent=1 // pred_fallthru
      _
    // Predicated region
    $region6: #{tpu_custom_call.1} parent=1 // pred_check
      _
    $region7: #{tpu_custom_call.1} parent=1 // pred_check_branch
      %14 = sbr.rel (0) target = $region9
    $region8: #{tpu_custom_call.1} parent=1 // pred_region
      _
    $region9: #{tpu_custom_call.1} parent=1 // pred_fallthru
      _
    // Predicated region
    $region10: #{tpu_custom_call.1} parent=1 // pred_check
      _
    $region11: #{tpu_custom_call.1} parent=1 // pred_check_branch
      %16 = sbr.rel (0) target = $region13
    $region12: #{tpu_custom_call.1} parent=1 // pred_region
      _
    $region13: #{tpu_custom_call.1} parent=1 // pred_fallthru
      _
    %p17 = scmp.eq.s32.totalorder 0, 0
    // Predicated region
    $region14: #{tpu_custom_call.1} parent=1 // pred_check
      %p18 = pneg %p17
    $region15: #{tpu_custom_call.1} parent=1 // pred_check_branch
      %20 = sbr.rel (%p18) target = $region17
    $region16: #{tpu_custom_call.1} parent=1 // pred_region
      %21 = vst [vmem:[#allocation2] sm:$0xff] 0.0
      %22 = vst [vmem:[#allocation2 + $0x8] sm:$0xff] 0.0
      %23 = vst [vmem:[#allocation2 + $0x10] sm:$0xff] 0.0
      %24 = vst [vmem:[#allocation2 + $0x18] sm:$0xff] 0.0
      %25 = vst [vmem:[#allocation2 + $0x20] sm:$0xff] 0.0
      %26 = vst [vmem:[#allocation2 + $0x28] sm:$0xff] 0.0
      %27 = vst [vmem:[#allocation2 + $0x30] sm:$0xff] 0.0
      %28 = vst [vmem:[#allocation2 + $0x38] sm:$0xff] 0.0
      %29 = vst [vmem:[#allocation2 + $0x40] sm:$0xff] 0.0
      %30 = vst [vmem:[#allocation2 + $0x48] sm:$0xff] 0.0
      %31 = vst [vmem:[#allocation2 + $0x50] sm:$0xff] 0.0
      %32 = vst [vmem:[#allocation2 + $0x58] sm:$0xff] 0.0
      %33 = vst [vmem:[#allocation2 + $0x60] sm:$0xff] 0.0
      %34 = vst [vmem:[#allocation2 + $0x68] sm:$0xff] 0.0
      %35 = vst [vmem:[#allocation2 + $0x70] sm:$0xff] 0.0
      %36 = vst [vmem:[#allocation2 + $0x78] sm:$0xff] 0.0
      %37 = vst [vmem:[#allocation2 + $0x80] sm:$0xff] 0.0
      %38 = vst [vmem:[#allocation2 + $0x88] sm:$0xff] 0.0
      %39 = vst [vmem:[#allocation2 + $0x90] sm:$0xff] 0.0
      %40 = vst [vmem:[#allocation2 + $0x98] sm:$0xff] 0.0
      %41 = vst [vmem:[#allocation2 + $0xa0] sm:$0xff] 0.0
      %42 = vst [vmem:[#allocation2 + $0xa8] sm:$0xff] 0.0
      %43 = vst [vmem:[#allocation2 + $0xb0] sm:$0xff] 0.0
      %44 = vst [vmem:[#allocation2 + $0xb8] sm:$0xff] 0.0
      %45 = vst [vmem:[#allocation2 + $0xc0] sm:$0xff] 0.0
      %46 = vst [vmem:[#allocation2 + $0xc8] sm:$0xff] 0.0
      %47 = vst [vmem:[#allocation2 + $0xd0] sm:$0xff] 0.0
      %48 = vst [vmem:[#allocation2 + $0xd8] sm:$0xff] 0.0
      %49 = vst [vmem:[#allocation2 + $0xe0] sm:$0xff] 0.0
      %50 = vst [vmem:[#allocation2 + $0xe8] sm:$0xff] 0.0
      %51 = vst [vmem:[#allocation2 + $0xf0] sm:$0xff] 0.0
      %52 = vst [vmem:[#allocation2 + $0xf8] sm:$0xff] 0.0
      %vm53 = vcmask 7168
      %54 = vst.msk [vmem:[#allocation3] sm:$0xff] %vm53, 0.0
      %55 = vst.msk [vmem:[#allocation3 + $0x8] sm:$0xff] %vm53, 0.0
      %56 = vst.msk [vmem:[#allocation3 + $0x10] sm:$0xff] %vm53, 0.0
      %57 = vst.msk [vmem:[#allocation3 + $0x18] sm:$0xff] %vm53, 0.0
      %58 = vst.msk [vmem:[#allocation3 + $0x20] sm:$0xff] %vm53, 0.0
      %59 = vst.msk [vmem:[#allocation3 + $0x28] sm:$0xff] %vm53, 0.0
      %60 = vst.msk [vmem:[#allocation3 + $0x30] sm:$0xff] %vm53, 0.0
      %61 = vst.msk [vmem:[#allocation3 + $0x38] sm:$0xff] %vm53, 0.0
      %62 = vst.msk [vmem:[#allocation3 + $0x40] sm:$0xff] %vm53, 0.0
      %63 = vst.msk [vmem:[#allocation3 + $0x48] sm:$0xff] %vm53, 0.0
      %64 = vst.msk [vmem:[#allocation3 + $0x50] sm:$0xff] %vm53, 0.0
      %65 = vst.msk [vmem:[#allocation3 + $0x58] sm:$0xff] %vm53, 0.0
      %66 = vst.msk [vmem:[#allocation3 + $0x60] sm:$0xff] %vm53, 0.0
      %67 = vst.msk [vmem:[#allocation3 + $0x68] sm:$0xff] %vm53, 0.0
      %68 = vst.msk [vmem:[#allocation3 + $0x70] sm:$0xff] %vm53, 0.0
      %69 = vst.msk [vmem:[#allocation3 + $0x78] sm:$0xff] %vm53, 0.0
      %70 = vst.msk [vmem:[#allocation3 + $0x80] sm:$0xff] %vm53, 0.0
      %71 = vst.msk [vmem:[#allocation3 + $0x88] sm:$0xff] %vm53, 0.0
      %72 = vst.msk [vmem:[#allocation3 + $0x90] sm:$0xff] %vm53, 0.0
      %73 = vst.msk [vmem:[#allocation3 + $0x98] sm:$0xff] %vm53, 0.0
      %74 = vst.msk [vmem:[#allocation3 + $0xa0] sm:$0xff] %vm53, 0.0
      %75 = vst.msk [vmem:[#allocation3 + $0xa8] sm:$0xff] %vm53, 0.0
      %76 = vst.msk [vmem:[#allocation3 + $0xb0] sm:$0xff] %vm53, 0.0
      %77 = vst.msk [vmem:[#allocation3 + $0xb8] sm:$0xff] %vm53, 0.0
      %78 = vst.msk [vmem:[#allocation3 + $0xc0] sm:$0xff] %vm53, 0.0
      %79 = vst.msk [vmem:[#allocation3 + $0xc8] sm:$0xff] %vm53, 0.0
      %80 = vst.msk [vmem:[#allocation3 + $0xd0] sm:$0xff] %vm53, 0.0
      %81 = vst.msk [vmem:[#allocation3 + $0xd8] sm:$0xff] %vm53, 0.0
      %82 = vst.msk [vmem:[#allocation3 + $0xe0] sm:$0xff] %vm53, 0.0
      %83 = vst.msk [vmem:[#allocation3 + $0xe8] sm:$0xff] %vm53, 0.0
      %84 = vst.msk [vmem:[#allocation3 + $0xf0] sm:$0xff] %vm53, 0.0
      %85 = vst.msk [vmem:[#allocation3 + $0xf8] sm:$0xff] %vm53, 0.0
    $region17: #{tpu_custom_call.1} parent=1 // pred_fallthru
      _
    %v86 = vld [vmem:[%s1] sm:$0xff]
    %v87 = vld [vmem:[%s1 + $0x8] sm:$0xff]
    %v88 = vld [vmem:[%s1 + $0x10] sm:$0xff]
    %v89 = vld [vmem:[%s1 + $0x18] sm:$0xff]
    %v90 = vld [vmem:[%s1 + $0x20] sm:$0xff]
    %v91 = vld [vmem:[%s1 + $0x28] sm:$0xff]
    %v92 = vld [vmem:[%s1 + $0x30] sm:$0xff]
    %v93 = vld [vmem:[%s1 + $0x38] sm:$0xff]
    %v94 = vld [vmem:[%s1 + $0x40] sm:$0xff]
    %v95 = vld [vmem:[%s1 + $0x48] sm:$0xff]
    %v96 = vld [vmem:[%s1 + $0x50] sm:$0xff]
    %v97 = vld [vmem:[%s1 + $0x58] sm:$0xff]
    %v98 = vld [vmem:[%s1 + $0x60] sm:$0xff]
    %v99 = vld [vmem:[%s1 + $0x68] sm:$0xff]
    %v100 = vld [vmem:[%s1 + $0x70] sm:$0xff]
    %v101 = vld [vmem:[%s1 + $0x78] sm:$0xff]
    %v102 = vld [vmem:[%s1 + $0x80] sm:$0xff]
    %v103 = vld [vmem:[%s1 + $0x88] sm:$0xff]
    %v104 = vld [vmem:[%s1 + $0x90] sm:$0xff]
    %v105 = vld [vmem:[%s1 + $0x98] sm:$0xff]
    %v106 = vld [vmem:[%s1 + $0xa0] sm:$0xff]
    %v107 = vld [vmem:[%s1 + $0xa8] sm:$0xff]
    %v108 = vld [vmem:[%s1 + $0xb0] sm:$0xff]
    %v109 = vld [vmem:[%s1 + $0xb8] sm:$0xff]
    %v110 = vld [vmem:[%s1 + $0xc0] sm:$0xff]
    %v111 = vld [vmem:[%s1 + $0xc8] sm:$0xff]
    %v112 = vld [vmem:[%s1 + $0xd0] sm:$0xff]
    %v113 = vld [vmem:[%s1 + $0xd8] sm:$0xff]
    %v114 = vld [vmem:[%s1 + $0xe0] sm:$0xff]
    %v115 = vld [vmem:[%s1 + $0xe8] sm:$0xff]
    %v116 = vld [vmem:[%s1 + $0xf0] sm:$0xff]
    %v117 = vld [vmem:[%s1 + $0xf8] sm:$0xff]
    %v118 = vld [vmem:[%s2] sm:$0x3]
    %119 = vset.pattern.permute.xlu0 0
    %120 = vperm.xlu0 %119, %v86
    %v121 = vpop.permute.xlu0 %120
    %122 = vset.pattern.permute.xlu0 0
    %123 = vperm.xlu0 %122, %v87
    %v124 = vpop.permute.xlu0 %123
    %125 = vset.pattern.permute.xlu0 0
    %126 = vperm.xlu0 %125, %v88
    %v127 = vpop.permute.xlu0 %126
    %128 = vset.pattern.permute.xlu0 0
    %129 = vperm.xlu0 %128, %v89
    %v130 = vpop.permute.xlu0 %129
    %131 = vset.pattern.permute.xlu0 0
    %132 = vperm.xlu0 %131, %v90
    %v133 = vpop.permute.xlu0 %132
    %134 = vset.pattern.permute.xlu0 0
    %135 = vperm.xlu0 %134, %v91
    %v136 = vpop.permute.xlu0 %135
    %137 = vset.pattern.permute.xlu0 0
    %138 = vperm.xlu0 %137, %v92
    %v139 = vpop.permute.xlu0 %138
    %140 = vset.pattern.permute.xlu0 0
    %141 = vperm.xlu0 %140, %v93
    %v142 = vpop.permute.xlu0 %141
    %143 = vset.pattern.permute.xlu0 0
    %144 = vperm.xlu0 %143, %v94
    %v145 = vpop.permute.xlu0 %144
    %146 = vset.pattern.permute.xlu0 0
    %147 = vperm.xlu0 %146, %v95
    %v148 = vpop.permute.xlu0 %147
    %149 = vset.pattern.permute.xlu0 0
    %150 = vperm.xlu0 %149, %v96
    %v151 = vpop.permute.xlu0 %150
    %152 = vset.pattern.permute.xlu0 0
    %153 = vperm.xlu0 %152, %v97
    %v154 = vpop.permute.xlu0 %153
    %155 = vset.pattern.permute.xlu0 0
    %156 = vperm.xlu0 %155, %v98
    %v157 = vpop.permute.xlu0 %156
    %158 = vset.pattern.permute.xlu0 0
    %159 = vperm.xlu0 %158, %v99
    %v160 = vpop.permute.xlu0 %159
    %161 = vset.pattern.permute.xlu0 0
    %162 = vperm.xlu0 %161, %v100
    %v163 = vpop.permute.xlu0 %162
    %164 = vset.pattern.permute.xlu0 0
    %165 = vperm.xlu0 %164, %v101
    %v166 = vpop.permute.xlu0 %165
    %167 = vset.pattern.permute.xlu0 0
    %168 = vperm.xlu0 %167, %v102
    %v169 = vpop.permute.xlu0 %168
    %170 = vset.pattern.permute.xlu0 0
    %171 = vperm.xlu0 %170, %v103
    %v172 = vpop.permute.xlu0 %171
    %173 = vset.pattern.permute.xlu0 0
    %174 = vperm.xlu0 %173, %v104
    %v175 = vpop.permute.xlu0 %174
    %176 = vset.pattern.permute.xlu0 0
    %177 = vperm.xlu0 %176, %v105
    %v178 = vpop.permute.xlu0 %177
    %179 = vset.pattern.permute.xlu0 0
    %180 = vperm.xlu0 %179, %v106
    %v181 = vpop.permute.xlu0 %180
    %182 = vset.pattern.permute.xlu0 0
    %183 = vperm.xlu0 %182, %v107
    %v184 = vpop.permute.xlu0 %183
    %185 = vset.pattern.permute.xlu0 0
    %186 = vperm.xlu0 %185, %v108
    %v187 = vpop.permute.xlu0 %186
    %188 = vset.pattern.permute.xlu0 0
    %189 = vperm.xlu0 %188, %v109
    %v190 = vpop.permute.xlu0 %189
    %191 = vset.pattern.permute.xlu0 0
    %192 = vperm.xlu0 %191, %v110
    %v193 = vpop.permute.xlu0 %192
    %194 = vset.pattern.permute.xlu0 0
    %195 = vperm.xlu0 %194, %v111
    %v196 = vpop.permute.xlu0 %195
    %197 = vset.pattern.permute.xlu0 0
    %198 = vperm.xlu0 %197, %v112
    %v199 = vpop.permute.xlu0 %198
    %200 = vset.pattern.permute.xlu0 0
    %201 = vperm.xlu0 %200, %v113
    %v202 = vpop.permute.xlu0 %201
    %203 = vset.pattern.permute.xlu0 0
    %204 = vperm.xlu0 %203, %v114
    %v205 = vpop.permute.xlu0 %204
    %206 = vset.pattern.permute.xlu0 0
    %207 = vperm.xlu0 %206, %v115
    %v208 = vpop.permute.xlu0 %207
    %209 = vset.pattern.permute.xlu0 0
    %210 = vperm.xlu0 %209, %v116
    %v211 = vpop.permute.xlu0 %210
    %212 = vset.pattern.permute.xlu0 0
    %213 = vperm.xlu0 %212, %v117
    %v214 = vpop.permute.xlu0 %213
    %v215 = vlaneseq
    %v216 = vshrl.u32 %v215, 7
    %v217 = vsub.s32 0, %v216
    %v218 = vrot.slane %v118, %v217
    %v219 = vlaneseq
    %v220 = vshrl.u32 %v219, 7
    %v221 = vsub.s32 1, %v220
    %v222 = vrot.slane %v118, %v221
    %vm223 = vcmp.eq.s32.totalorder %v121, %v218
    %vm224 = vcmp.eq.s32.totalorder %v121, %v222
    %vm225 = vcmp.eq.s32.totalorder %v124, %v218
    %vm226 = vcmp.eq.s32.totalorder %v124, %v222
    %vm227 = vcmp.eq.s32.totalorder %v127, %v218
    %vm228 = vcmp.eq.s32.totalorder %v127, %v222
    %vm229 = vcmp.eq.s32.totalorder %v130, %v218
    %vm230 = vcmp.eq.s32.totalorder %v130, %v222
    %vm231 = vcmp.eq.s32.totalorder %v133, %v218
    %vm232 = vcmp.eq.s32.totalorder %v133, %v222
    %vm233 = vcmp.eq.s32.totalorder %v136, %v218
    %vm234 = vcmp.eq.s32.totalorder %v136, %v222
    %vm235 = vcmp.eq.s32.totalorder %v139, %v218
    %vm236 = vcmp.eq.s32.totalorder %v139, %v222
    %vm237 = vcmp.eq.s32.totalorder %v142, %v218
    %vm238 = vcmp.eq.s32.totalorder %v142, %v222
    %vm239 = vcmp.eq.s32.totalorder %v145, %v218
    %vm240 = vcmp.eq.s32.totalorder %v145, %v222
    %vm241 = vcmp.eq.s32.totalorder %v148, %v218
    %vm242 = vcmp.eq.s32.totalorder %v148, %v222
    %vm243 = vcmp.eq.s32.totalorder %v151, %v218
    %vm244 = vcmp.eq.s32.totalorder %v151, %v222
    %vm245 = vcmp.eq.s32.totalorder %v154, %v218
    %vm246 = vcmp.eq.s32.totalorder %v154, %v222
    %vm247 = vcmp.eq.s32.totalorder %v157, %v218
    %vm248 = vcmp.eq.s32.totalorder %v157, %v222
    %vm249 = vcmp.eq.s32.totalorder %v160, %v218
    %vm250 = vcmp.eq.s32.totalorder %v160, %v222
    %vm251 = vcmp.eq.s32.totalorder %v163, %v218
    %vm252 = vcmp.eq.s32.totalorder %v163, %v222
    %vm253 = vcmp.eq.s32.totalorder %v166, %v218
    %vm254 = vcmp.eq.s32.totalorder %v166, %v222
    %vm255 = vcmp.eq.s32.totalorder %v169, %v218
    %vm256 = vcmp.eq.s32.totalorder %v169, %v222
    %vm257 = vcmp.eq.s32.totalorder %v172, %v218
    %vm258 = vcmp.eq.s32.totalorder %v172, %v222
    %vm259 = vcmp.eq.s32.totalorder %v175, %v218
    %vm260 = vcmp.eq.s32.totalorder %v175, %v222
    %vm261 = vcmp.eq.s32.totalorder %v178, %v218
    %vm262 = vcmp.eq.s32.totalorder %v178, %v222
    %vm263 = vcmp.eq.s32.totalorder %v181, %v218
    %vm264 = vcmp.eq.s32.totalorder %v181, %v222
    %vm265 = vcmp.eq.s32.totalorder %v184, %v218
    %vm266 = vcmp.eq.s32.totalorder %v184, %v222
    %vm267 = vcmp.eq.s32.totalorder %v187, %v218
    %vm268 = vcmp.eq.s32.totalorder %v187, %v222
    %vm269 = vcmp.eq.s32.totalorder %v190, %v218
    %vm270 = vcmp.eq.s32.totalorder %v190, %v222
    %vm271 = vcmp.eq.s32.totalorder %v193, %v218
    %vm272 = vcmp.eq.s32.totalorder %v193, %v222
    %vm273 = vcmp.eq.s32.totalorder %v196, %v218
    %vm274 = vcmp.eq.s32.totalorder %v196, %v222
    %vm275 = vcmp.eq.s32.totalorder %v199, %v218
    %vm276 = vcmp.eq.s32.totalorder %v199, %v222
    %vm277 = vcmp.eq.s32.totalorder %v202, %v218
    %vm278 = vcmp.eq.s32.totalorder %v202, %v222
    %vm279 = vcmp.eq.s32.totalorder %v205, %v218
    %vm280 = vcmp.eq.s32.totalorder %v205, %v222
    %vm281 = vcmp.eq.s32.totalorder %v208, %v218
    %vm282 = vcmp.eq.s32.totalorder %v208, %v222
    %vm283 = vcmp.eq.s32.totalorder %v211, %v218
    %vm284 = vcmp.eq.s32.totalorder %v211, %v222
    %vm285 = vcmp.eq.s32.totalorder %v214, %v218
    %vm286 = vcmp.eq.s32.totalorder %v214, %v222
    %v287 = vsel %vm223, 1.0, 0.0
    %v288 = vsel %vm224, 1.0, 0.0
    %v289 = vsel %vm225, 1.0, 0.0
    %v290 = vsel %vm226, 1.0, 0.0
    %v291 = vsel %vm227, 1.0, 0.0
    %v292 = vsel %vm228, 1.0, 0.0
    %v293 = vsel %vm229, 1.0, 0.0
    %v294 = vsel %vm230, 1.0, 0.0
    %v295 = vsel %vm231, 1.0, 0.0
    %v296 = vsel %vm232, 1.0, 0.0
    %v297 = vsel %vm233, 1.0, 0.0
    %v298 = vsel %vm234, 1.0, 0.0
    %v299 = vsel %vm235, 1.0, 0.0
    %v300 = vsel %vm236, 1.0, 0.0
    %v301 = vsel %vm237, 1.0, 0.0
    %v302 = vsel %vm238, 1.0, 0.0
    %v303 = vsel %vm239, 1.0, 0.0
    %v304 = vsel %vm240, 1.0, 0.0
    %v305 = vsel %vm241, 1.0, 0.0
    %v306 = vsel %vm242, 1.0, 0.0
    %v307 = vsel %vm243, 1.0, 0.0
    %v308 = vsel %vm244, 1.0, 0.0
    %v309 = vsel %vm245, 1.0, 0.0
    %v310 = vsel %vm246, 1.0, 0.0
    %v311 = vsel %vm247, 1.0, 0.0
    %v312 = vsel %vm248, 1.0, 0.0
    %v313 = vsel %vm249, 1.0, 0.0
    %v314 = vsel %vm250, 1.0, 0.0
    %v315 = vsel %vm251, 1.0, 0.0
    %v316 = vsel %vm252, 1.0, 0.0
    %v317 = vsel %vm253, 1.0, 0.0
    %v318 = vsel %vm254, 1.0, 0.0
    %v319 = vsel %vm255, 1.0, 0.0
    %v320 = vsel %vm256, 1.0, 0.0
    %v321 = vsel %vm257, 1.0, 0.0
    %v322 = vsel %vm258, 1.0, 0.0
    %v323 = vsel %vm259, 1.0, 0.0
    %v324 = vsel %vm260, 1.0, 0.0
    %v325 = vsel %vm261, 1.0, 0.0
    %v326 = vsel %vm262, 1.0, 0.0
    %v327 = vsel %vm263, 1.0, 0.0
    %v328 = vsel %vm264, 1.0, 0.0
    %v329 = vsel %vm265, 1.0, 0.0
    %v330 = vsel %vm266, 1.0, 0.0
    %v331 = vsel %vm267, 1.0, 0.0
    %v332 = vsel %vm268, 1.0, 0.0
    %v333 = vsel %vm269, 1.0, 0.0
    %v334 = vsel %vm270, 1.0, 0.0
    %v335 = vsel %vm271, 1.0, 0.0
    %v336 = vsel %vm272, 1.0, 0.0
    %v337 = vsel %vm273, 1.0, 0.0
    %v338 = vsel %vm274, 1.0, 0.0
    %v339 = vsel %vm275, 1.0, 0.0
    %v340 = vsel %vm276, 1.0, 0.0
    %v341 = vsel %vm277, 1.0, 0.0
    %v342 = vsel %vm278, 1.0, 0.0
    %v343 = vsel %vm279, 1.0, 0.0
    %v344 = vsel %vm280, 1.0, 0.0
    %v345 = vsel %vm281, 1.0, 0.0
    %v346 = vsel %vm282, 1.0, 0.0
    %v347 = vsel %vm283, 1.0, 0.0
    %v348 = vsel %vm284, 1.0, 0.0
    %v349 = vsel %vm285, 1.0, 0.0
    %v350 = vsel %vm286, 1.0, 0.0
    %v351 = vld [vmem:[#allocation3] sm:$0xff]
    %v352 = vld [vmem:[#allocation3 + $0x8] sm:$0xff]
    %v353 = vld [vmem:[#allocation3 + $0x10] sm:$0xff]
    %v354 = vld [vmem:[#allocation3 + $0x18] sm:$0xff]
    %v355 = vld [vmem:[#allocation3 + $0x20] sm:$0xff]
    %v356 = vld [vmem:[#allocation3 + $0x28] sm:$0xff]
    %v357 = vld [vmem:[#allocation3 + $0x30] sm:$0xff]
    %v358 = vld [vmem:[#allocation3 + $0x38] sm:$0xff]
    %v359 = vld [vmem:[#allocation3 + $0x40] sm:$0xff]
    %v360 = vld [vmem:[#allocation3 + $0x48] sm:$0xff]
    %v361 = vld [vmem:[#allocation3 + $0x50] sm:$0xff]
    %v362 = vld [vmem:[#allocation3 + $0x58] sm:$0xff]
    %v363 = vld [vmem:[#allocation3 + $0x60] sm:$0xff]
    %v364 = vld [vmem:[#allocation3 + $0x68] sm:$0xff]
    %v365 = vld [vmem:[#allocation3 + $0x70] sm:$0xff]
    %v366 = vld [vmem:[#allocation3 + $0x78] sm:$0xff]
    %v367 = vld [vmem:[#allocation3 + $0x80] sm:$0xff]
    %v368 = vld [vmem:[#allocation3 + $0x88] sm:$0xff]
    %v369 = vld [vmem:[#allocation3 + $0x90] sm:$0xff]
    %v370 = vld [vmem:[#allocation3 + $0x98] sm:$0xff]
    %v371 = vld [vmem:[#allocation3 + $0xa0] sm:$0xff]
    %v372 = vld [vmem:[#allocation3 + $0xa8] sm:$0xff]
    %v373 = vld [vmem:[#allocation3 + $0xb0] sm:$0xff]
    %v374 = vld [vmem:[#allocation3 + $0xb8] sm:$0xff]
    %v375 = vld [vmem:[#allocation3 + $0xc0] sm:$0xff]
    %v376 = vld [vmem:[#allocation3 + $0xc8] sm:$0xff]
    %v377 = vld [vmem:[#allocation3 + $0xd0] sm:$0xff]
    %v378 = vld [vmem:[#allocation3 + $0xd8] sm:$0xff]
    %v379 = vld [vmem:[#allocation3 + $0xe0] sm:$0xff]
    %v380 = vld [vmem:[#allocation3 + $0xe8] sm:$0xff]
    %v381 = vld [vmem:[#allocation3 + $0xf0] sm:$0xff]
    %v382 = vld [vmem:[#allocation3 + $0xf8] sm:$0xff]
    %v383 = vadd.f32 %v287, %v288
    %384 = vadd.xlane.f32.xlu0 %v383
    %v385 = vpop.xlane.xlu0 %384
    %v386 = vadd.f32 %v289, %v290
    %387 = vadd.xlane.f32.xlu0 %v386
    %v388 = vpop.xlane.xlu0 %387
    %v389 = vadd.f32 %v291, %v292
    %390 = vadd.xlane.f32.xlu0 %v389
    %v391 = vpop.xlane.xlu0 %390
    %v392 = vadd.f32 %v293, %v294
    %393 = vadd.xlane.f32.xlu0 %v392
    %v394 = vpop.xlane.xlu0 %393
    %v395 = vadd.f32 %v295, %v296
    %396 = vadd.xlane.f32.xlu0 %v395
    %v397 = vpop.xlane.xlu0 %396
    %v398 = vadd.f32 %v297, %v298
    %399 = vadd.xlane.f32.xlu0 %v398
    %v400 = vpop.xlane.xlu0 %399
    %v401 = vadd.f32 %v299, %v300
    %402 = vadd.xlane.f32.xlu0 %v401
    %v403 = vpop.xlane.xlu0 %402
    %v404 = vadd.f32 %v301, %v302
    %405 = vadd.xlane.f32.xlu0 %v404
    %v406 = vpop.xlane.xlu0 %405
    %v407 = vadd.f32 %v303, %v304
    %408 = vadd.xlane.f32.xlu0 %v407
    %v409 = vpop.xlane.xlu0 %408
    %v410 = vadd.f32 %v305, %v306
    %411 = vadd.xlane.f32.xlu0 %v410
    %v412 = vpop.xlane.xlu0 %411
    %v413 = vadd.f32 %v307, %v308
    %414 = vadd.xlane.f32.xlu0 %v413
    %v415 = vpop.xlane.xlu0 %414
    %v416 = vadd.f32 %v309, %v310
    %417 = vadd.xlane.f32.xlu0 %v416
    %v418 = vpop.xlane.xlu0 %417
    %v419 = vadd.f32 %v311, %v312
    %420 = vadd.xlane.f32.xlu0 %v419
    %v421 = vpop.xlane.xlu0 %420
    %v422 = vadd.f32 %v313, %v314
    %423 = vadd.xlane.f32.xlu0 %v422
    %v424 = vpop.xlane.xlu0 %423
    %v425 = vadd.f32 %v315, %v316
    %426 = vadd.xlane.f32.xlu0 %v425
    %v427 = vpop.xlane.xlu0 %426
    %v428 = vadd.f32 %v317, %v318
    %429 = vadd.xlane.f32.xlu0 %v428
    %v430 = vpop.xlane.xlu0 %429
    %v431 = vadd.f32 %v319, %v320
    %432 = vadd.xlane.f32.xlu0 %v431
    %v433 = vpop.xlane.xlu0 %432
    %v434 = vadd.f32 %v321, %v322
    %435 = vadd.xlane.f32.xlu0 %v434
    %v436 = vpop.xlane.xlu0 %435
    %v437 = vadd.f32 %v323, %v324
    %438 = vadd.xlane.f32.xlu0 %v437
    %v439 = vpop.xlane.xlu0 %438
    %v440 = vadd.f32 %v325, %v326
    %441 = vadd.xlane.f32.xlu0 %v440
    %v442 = vpop.xlane.xlu0 %441
    %v443 = vadd.f32 %v327, %v328
    %444 = vadd.xlane.f32.xlu0 %v443
    %v445 = vpop.xlane.xlu0 %444
    %v446 = vadd.f32 %v329, %v330
    %447 = vadd.xlane.f32.xlu0 %v446
    %v448 = vpop.xlane.xlu0 %447
    %v449 = vadd.f32 %v331, %v332
    %450 = vadd.xlane.f32.xlu0 %v449
    %v451 = vpop.xlane.xlu0 %450
    %v452 = vadd.f32 %v333, %v334
    %453 = vadd.xlane.f32.xlu0 %v452
    %v454 = vpop.xlane.xlu0 %453
    %v455 = vadd.f32 %v335, %v336
    %456 = vadd.xlane.f32.xlu0 %v455
    %v457 = vpop.xlane.xlu0 %456
    %v458 = vadd.f32 %v337, %v338
    %459 = vadd.xlane.f32.xlu0 %v458
    %v460 = vpop.xlane.xlu0 %459
    %v461 = vadd.f32 %v339, %v340
    %462 = vadd.xlane.f32.xlu0 %v461
    %v463 = vpop.xlane.xlu0 %462
    %v464 = vadd.f32 %v341, %v342
    %465 = vadd.xlane.f32.xlu0 %v464
    %v466 = vpop.xlane.xlu0 %465
    %v467 = vadd.f32 %v343, %v344
    %468 = vadd.xlane.f32.xlu0 %v467
    %v469 = vpop.xlane.xlu0 %468
    %v470 = vadd.f32 %v345, %v346
    %471 = vadd.xlane.f32.xlu0 %v470
    %v472 = vpop.xlane.xlu0 %471
    %v473 = vadd.f32 %v347, %v348
    %474 = vadd.xlane.f32.xlu0 %v473
    %v475 = vpop.xlane.xlu0 %474
    %v476 = vadd.f32 %v349, %v350
    %477 = vadd.xlane.f32.xlu0 %v476
    %v478 = vpop.xlane.xlu0 %477
    %v479 = vadd.f32 %v351, %v385
    %v480 = vadd.f32 %v352, %v388
    %v481 = vadd.f32 %v353, %v391
    %v482 = vadd.f32 %v354, %v394
    %v483 = vadd.f32 %v355, %v397
    %v484 = vadd.f32 %v356, %v400
    %v485 = vadd.f32 %v357, %v403
    %v486 = vadd.f32 %v358, %v406
    %v487 = vadd.f32 %v359, %v409
    %v488 = vadd.f32 %v360, %v412
    %v489 = vadd.f32 %v361, %v415
    %v490 = vadd.f32 %v362, %v418
    %v491 = vadd.f32 %v363, %v421
    %v492 = vadd.f32 %v364, %v424
    %v493 = vadd.f32 %v365, %v427
    %v494 = vadd.f32 %v366, %v430
    %v495 = vadd.f32 %v367, %v433
    %v496 = vadd.f32 %v368, %v436
    %v497 = vadd.f32 %v369, %v439
    %v498 = vadd.f32 %v370, %v442
    %v499 = vadd.f32 %v371, %v445
    %v500 = vadd.f32 %v372, %v448
    %v501 = vadd.f32 %v373, %v451
    %v502 = vadd.f32 %v374, %v454
    %v503 = vadd.f32 %v375, %v457
    %v504 = vadd.f32 %v376, %v460
    %v505 = vadd.f32 %v377, %v463
    %v506 = vadd.f32 %v378, %v466
    %v507 = vadd.f32 %v379, %v469
    %v508 = vadd.f32 %v380, %v472
    %v509 = vadd.f32 %v381, %v475
    %v510 = vadd.f32 %v382, %v478
    %vm511 = vcmask 7168
    %512 = vst.msk [vmem:[#allocation3] sm:$0xff] %vm511, %v479
    %513 = vst.msk [vmem:[#allocation3 + $0x8] sm:$0xff] %vm511, %v480
    %514 = vst.msk [vmem:[#allocation3 + $0x10] sm:$0xff] %vm511, %v481
    %515 = vst.msk [vmem:[#allocation3 + $0x18] sm:$0xff] %vm511, %v482
    %516 = vst.msk [vmem:[#allocation3 + $0x20] sm:$0xff] %vm511, %v483
    %517 = vst.msk [vmem:[#allocation3 + $0x28] sm:$0xff] %vm511, %v484
    %518 = vst.msk [vmem:[#allocation3 + $0x30] sm:$0xff] %vm511, %v485
    %519 = vst.msk [vmem:[#allocation3 + $0x38] sm:$0xff] %vm511, %v486
    %520 = vst.msk [vmem:[#allocation3 + $0x40] sm:$0xff] %vm511, %v487
    %521 = vst.msk [vmem:[#allocation3 + $0x48] sm:$0xff] %vm511, %v488
    %522 = vst.msk [vmem:[#allocation3 + $0x50] sm:$0xff] %vm511, %v489
    %523 = vst.msk [vmem:[#allocation3 + $0x58] sm:$0xff] %vm511, %v490
    %524 = vst.msk [vmem:[#allocation3 + $0x60] sm:$0xff] %vm511, %v491
    %525 = vst.msk [vmem:[#allocation3 + $0x68] sm:$0xff] %vm511, %v492
    %526 = vst.msk [vmem:[#allocation3 + $0x70] sm:$0xff] %vm511, %v493
    %527 = vst.msk [vmem:[#allocation3 + $0x78] sm:$0xff] %vm511, %v494
    %528 = vst.msk [vmem:[#allocation3 + $0x80] sm:$0xff] %vm511, %v495
    %529 = vst.msk [vmem:[#allocation3 + $0x88] sm:$0xff] %vm511, %v496
    %530 = vst.msk [vmem:[#allocation3 + $0x90] sm:$0xff] %vm511, %v497
    %531 = vst.msk [vmem:[#allocation3 + $0x98] sm:$0xff] %vm511, %v498
    %532 = vst.msk [vmem:[#allocation3 + $0xa0] sm:$0xff] %vm511, %v499
    %533 = vst.msk [vmem:[#allocation3 + $0xa8] sm:$0xff] %vm511, %v500
    %534 = vst.msk [vmem:[#allocation3 + $0xb0] sm:$0xff] %vm511, %v501
    %535 = vst.msk [vmem:[#allocation3 + $0xb8] sm:$0xff] %vm511, %v502
    %536 = vst.msk [vmem:[#allocation3 + $0xc0] sm:$0xff] %vm511, %v503
    %537 = vst.msk [vmem:[#allocation3 + $0xc8] sm:$0xff] %vm511, %v504
    %538 = vst.msk [vmem:[#allocation3 + $0xd0] sm:$0xff] %vm511, %v505
    %539 = vst.msk [vmem:[#allocation3 + $0xd8] sm:$0xff] %vm511, %v506
    %540 = vst.msk [vmem:[#allocation3 + $0xe0] sm:$0xff] %vm511, %v507
    %541 = vst.msk [vmem:[#allocation3 + $0xe8] sm:$0xff] %vm511, %v508
    %542 = vst.msk [vmem:[#allocation3 + $0xf0] sm:$0xff] %vm511, %v509
    %543 = vst.msk [vmem:[#allocation3 + $0xf8] sm:$0xff] %vm511, %v510
    %v544 = vld [vmem:[#allocation2] sm:$0xff]
    %v545 = vld [vmem:[#allocation2 + $0x8] sm:$0xff]
    %v546 = vld [vmem:[#allocation2 + $0x10] sm:$0xff]
    %v547 = vld [vmem:[#allocation2 + $0x18] sm:$0xff]
    %v548 = vld [vmem:[#allocation2 + $0x20] sm:$0xff]
    %v549 = vld [vmem:[#allocation2 + $0x28] sm:$0xff]
    %v550 = vld [vmem:[#allocation2 + $0x30] sm:$0xff]
    %v551 = vld [vmem:[#allocation2 + $0x38] sm:$0xff]
    %v552 = vld [vmem:[#allocation2 + $0x40] sm:$0xff]
    %v553 = vld [vmem:[#allocation2 + $0x48] sm:$0xff]
    %v554 = vld [vmem:[#allocation2 + $0x50] sm:$0xff]
    %v555 = vld [vmem:[#allocation2 + $0x58] sm:$0xff]
    %v556 = vld [vmem:[#allocation2 + $0x60] sm:$0xff]
    %v557 = vld [vmem:[#allocation2 + $0x68] sm:$0xff]
    %v558 = vld [vmem:[#allocation2 + $0x70] sm:$0xff]
    %v559 = vld [vmem:[#allocation2 + $0x78] sm:$0xff]
    %v560 = vld [vmem:[#allocation2 + $0x80] sm:$0xff]
    %v561 = vld [vmem:[#allocation2 + $0x88] sm:$0xff]
    %v562 = vld [vmem:[#allocation2 + $0x90] sm:$0xff]
    %v563 = vld [vmem:[#allocation2 + $0x98] sm:$0xff]
    %v564 = vld [vmem:[#allocation2 + $0xa0] sm:$0xff]
    %v565 = vld [vmem:[#allocation2 + $0xa8] sm:$0xff]
    %v566 = vld [vmem:[#allocation2 + $0xb0] sm:$0xff]
    %v567 = vld [vmem:[#allocation2 + $0xb8] sm:$0xff]
    %v568 = vld [vmem:[#allocation2 + $0xc0] sm:$0xff]
    %v569 = vld [vmem:[#allocation2 + $0xc8] sm:$0xff]
    %v570 = vld [vmem:[#allocation2 + $0xd0] sm:$0xff]
    %v571 = vld [vmem:[#allocation2 + $0xd8] sm:$0xff]
    %v572 = vld [vmem:[#allocation2 + $0xe0] sm:$0xff]
    %v573 = vld [vmem:[#allocation2 + $0xe8] sm:$0xff]
    %v574 = vld [vmem:[#allocation2 + $0xf0] sm:$0xff]
    %v575 = vld [vmem:[#allocation2 + $0xf8] sm:$0xff]
    %v576 = vld [vmem:[%s0] sm:$0xff]
    %v577 = vld [vmem:[%s0 + $0x8] sm:$0xff]
    %v578 = vld [vmem:[%s0 + $0x10] sm:$0xff]
    %v579 = vld [vmem:[%s0 + $0x18] sm:$0xff]
    %v580 = vld [vmem:[%s0 + $0x20] sm:$0xff]
    %v581 = vld [vmem:[%s0 + $0x28] sm:$0xff]
    %v582 = vld [vmem:[%s0 + $0x30] sm:$0xff]
    %v583 = vld [vmem:[%s0 + $0x38] sm:$0xff]
    %v584 = vld [vmem:[%s0 + $0x40] sm:$0xff]
    %v585 = vld [vmem:[%s0 + $0x48] sm:$0xff]
    %v586 = vld [vmem:[%s0 + $0x50] sm:$0xff]
    %v587 = vld [vmem:[%s0 + $0x58] sm:$0xff]
    %v588 = vld [vmem:[%s0 + $0x60] sm:$0xff]
    %v589 = vld [vmem:[%s0 + $0x68] sm:$0xff]
    %v590 = vld [vmem:[%s0 + $0x70] sm:$0xff]
    %v591 = vld [vmem:[%s0 + $0x78] sm:$0xff]
    %v592 = vld [vmem:[%s0 + $0x80] sm:$0xff]
    %v593 = vld [vmem:[%s0 + $0x88] sm:$0xff]
    %v594 = vld [vmem:[%s0 + $0x90] sm:$0xff]
    %v595 = vld [vmem:[%s0 + $0x98] sm:$0xff]
    %v596 = vld [vmem:[%s0 + $0xa0] sm:$0xff]
    %v597 = vld [vmem:[%s0 + $0xa8] sm:$0xff]
    %v598 = vld [vmem:[%s0 + $0xb0] sm:$0xff]
    %v599 = vld [vmem:[%s0 + $0xb8] sm:$0xff]
    %v600 = vld [vmem:[%s0 + $0xc0] sm:$0xff]
    %v601 = vld [vmem:[%s0 + $0xc8] sm:$0xff]
    %v602 = vld [vmem:[%s0 + $0xd0] sm:$0xff]
    %v603 = vld [vmem:[%s0 + $0xd8] sm:$0xff]
    %v604 = vld [vmem:[%s0 + $0xe0] sm:$0xff]
    %v605 = vld [vmem:[%s0 + $0xe8] sm:$0xff]
    %v606 = vld [vmem:[%s0 + $0xf0] sm:$0xff]
    %v607 = vld [vmem:[%s0 + $0xf8] sm:$0xff]
    %608 = vmatprep.subr.mxu0 0.0
    %609 = vmatpush1.msra.mxu0 %v591
    %610 = vmatprep.subr.mxu0 0.0
    %611 = vmatpush1.msra.mxu0 %v590
    %612 = vmatprep.subr.mxu0 0.0
    %613 = vmatpush1.msra.mxu0 %v589
    %614 = vmatprep.subr.mxu0 0.0
    %615 = vmatpush1.msra.mxu0 %v588
    %616 = vmatprep.subr.mxu0 0.0
    %617 = vmatpush1.msra.mxu0 %v587
    %618 = vmatprep.subr.mxu0 0.0
    %619 = vmatpush1.msra.mxu0 %v586
    %620 = vmatprep.subr.mxu0 0.0
    %621 = vmatpush1.msra.mxu0 %v585
    %622 = vmatprep.subr.mxu0 0.0
    %623 = vmatpush1.msra.mxu0 %v584
    %624 = vmatprep.subr.mxu0 0.0
    %625 = vmatpush1.msra.mxu0 %v583
    %626 = vmatprep.subr.mxu0 0.0
    %627 = vmatpush1.msra.mxu0 %v582
    %628 = vmatprep.subr.mxu0 0.0
    %629 = vmatpush1.msra.mxu0 %v581
    %630 = vmatprep.subr.mxu0 0.0
    %631 = vmatpush1.msra.mxu0 %v580
    %632 = vmatprep.subr.mxu0 0.0
    %633 = vmatpush1.msra.mxu0 %v579
    %634 = vmatprep.subr.mxu0 0.0
    %635 = vmatpush1.msra.mxu0 %v578
    %636 = vmatprep.subr.mxu0 0.0
    %637 = vmatpush1.msra.mxu0 %v577
    %638 = vmatprep.subr.mxu0 0.0
    %639 = vmatpush1.msra.mxu0 %v576
    %640 = vmatprep.subr.mxu0 0.0
    %641 = vmatpush2.msra.mxu0 %v607
    %642 = vmatprep.subr.mxu0 0.0
    %643 = vmatpush2.msra.mxu0 %v606
    %644 = vmatprep.subr.mxu0 0.0
    %645 = vmatpush2.msra.mxu0 %v605
    %646 = vmatprep.subr.mxu0 0.0
    %647 = vmatpush2.msra.mxu0 %v604
    %648 = vmatprep.subr.mxu0 0.0
    %649 = vmatpush2.msra.mxu0 %v603
    %650 = vmatprep.subr.mxu0 0.0
    %651 = vmatpush2.msra.mxu0 %v602
    %652 = vmatprep.subr.mxu0 0.0
    %653 = vmatpush2.msra.mxu0 %v601
    %654 = vmatprep.subr.mxu0 0.0
    %655 = vmatpush2.msra.mxu0 %v600
    %656 = vmatprep.subr.mxu0 0.0
    %657 = vmatpush2.msra.mxu0 %v599
    %658 = vmatprep.subr.mxu0 0.0
    %659 = vmatpush2.msra.mxu0 %v598
    %660 = vmatprep.subr.mxu0 0.0
    %661 = vmatpush2.msra.mxu0 %v597
    %662 = vmatprep.subr.mxu0 0.0
    %663 = vmatpush2.msra.mxu0 %v596
    %664 = vmatprep.subr.mxu0 0.0
    %665 = vmatpush2.msra.mxu0 %v595
    %666 = vmatprep.subr.mxu0 0.0
    %667 = vmatpush2.msra.mxu0 %v594
    %668 = vmatprep.subr.mxu0 0.0
    %669 = vmatpush2.msra.mxu0 %v593
    %670 = vmatprep.subr.mxu0 0.0
    %671 = vmatpush2.msra.mxu0 %v592
    %672 = vmatprep.mubr.f32.mxu0 %v288
    %673 = vmatmul.mubr.f32.gmra.mxu0 %v287
    %v674 = vpop.f32.mrf.mxu0
    %v675 = vadd.f32 0.0, %v674
    %v676 = vpop.f32.mrf.mxu0
    %677 = vmatprep.mubr.f32.mxu0 %v290
    %678 = vmatmul.mubr.f32.gmra.mxu0 %v289
    %v679 = vpop.f32.mrf.mxu0
    %v680 = vadd.f32 0.0, %v679
    %v681 = vpop.f32.mrf.mxu0
    %682 = vmatprep.mubr.f32.mxu0 %v292
    %683 = vmatmul.mubr.f32.gmra.mxu0 %v291
    %v684 = vpop.f32.mrf.mxu0
    %v685 = vadd.f32 0.0, %v684
    %v686 = vpop.f32.mrf.mxu0
    %687 = vmatprep.mubr.f32.mxu0 %v294
    %688 = vmatmul.mubr.f32.gmra.mxu0 %v293
    %v689 = vpop.f32.mrf.mxu0
    %v690 = vadd.f32 0.0, %v689
    %v691 = vpop.f32.mrf.mxu0
    %692 = vmatprep.mubr.f32.mxu0 %v296
    %693 = vmatmul.mubr.f32.gmra.mxu0 %v295
    %v694 = vpop.f32.mrf.mxu0
    %v695 = vadd.f32 0.0, %v694
    %v696 = vpop.f32.mrf.mxu0
    %697 = vmatprep.mubr.f32.mxu0 %v298
    %698 = vmatmul.mubr.f32.gmra.mxu0 %v297
    %v699 = vpop.f32.mrf.mxu0
    %v700 = vadd.f32 0.0, %v699
    %v701 = vpop.f32.mrf.mxu0
    %702 = vmatprep.mubr.f32.mxu0 %v300
    %703 = vmatmul.mubr.f32.gmra.mxu0 %v299
    %v704 = vpop.f32.mrf.mxu0
    %v705 = vadd.f32 0.0, %v704
    %v706 = vpop.f32.mrf.mxu0
    %707 = vmatprep.mubr.f32.mxu0 %v302
    %708 = vmatmul.mubr.f32.gmra.mxu0 %v301
    %v709 = vpop.f32.mrf.mxu0
    %v710 = vadd.f32 0.0, %v709
    %v711 = vpop.f32.mrf.mxu0
    %712 = vmatprep.mubr.f32.mxu0 %v304
    %713 = vmatmul.mubr.f32.gmra.mxu0 %v303
    %v714 = vpop.f32.mrf.mxu0
    %v715 = vadd.f32 0.0, %v714
    %v716 = vpop.f32.mrf.mxu0
    %717 = vmatprep.mubr.f32.mxu0 %v306
    %718 = vmatmul.mubr.f32.gmra.mxu0 %v305
    %v719 = vpop.f32.mrf.mxu0
    %v720 = vadd.f32 0.0, %v719
    %v721 = vpop.f32.mrf.mxu0
    %722 = vmatprep.mubr.f32.mxu0 %v308
    %723 = vmatmul.mubr.f32.gmra.mxu0 %v307
    %v724 = vpop.f32.mrf.mxu0
    %v725 = vadd.f32 0.0, %v724
    %v726 = vpop.f32.mrf.mxu0
    %727 = vmatprep.mubr.f32.mxu0 %v310
    %728 = vmatmul.mubr.f32.gmra.mxu0 %v309
    %v729 = vpop.f32.mrf.mxu0
    %v730 = vadd.f32 0.0, %v729
    %v731 = vpop.f32.mrf.mxu0
    %732 = vmatprep.mubr.f32.mxu0 %v312
    %733 = vmatmul.mubr.f32.gmra.mxu0 %v311
    %v734 = vpop.f32.mrf.mxu0
    %v735 = vadd.f32 0.0, %v734
    %v736 = vpop.f32.mrf.mxu0
    %737 = vmatprep.mubr.f32.mxu0 %v314
    %738 = vmatmul.mubr.f32.gmra.mxu0 %v313
    %v739 = vpop.f32.mrf.mxu0
    %v740 = vadd.f32 0.0, %v739
    %v741 = vpop.f32.mrf.mxu0
    %742 = vmatprep.mubr.f32.mxu0 %v316
    %743 = vmatmul.mubr.f32.gmra.mxu0 %v315
    %v744 = vpop.f32.mrf.mxu0
    %v745 = vadd.f32 0.0, %v744
    %v746 = vpop.f32.mrf.mxu0
    %747 = vmatprep.mubr.f32.mxu0 %v318
    %748 = vmatmul.mubr.f32.gmra.mxu0 %v317
    %v749 = vpop.f32.mrf.mxu0
    %v750 = vadd.f32 0.0, %v749
    %v751 = vpop.f32.mrf.mxu0
    %752 = vmatprep.mubr.f32.mxu0 %v320
    %753 = vmatmul.mubr.f32.gmra.mxu0 %v319
    %v754 = vpop.f32.mrf.mxu0
    %v755 = vadd.f32 0.0, %v754
    %v756 = vpop.f32.mrf.mxu0
    %757 = vmatprep.mubr.f32.mxu0 %v322
    %758 = vmatmul.mubr.f32.gmra.mxu0 %v321
    %v759 = vpop.f32.mrf.mxu0
    %v760 = vadd.f32 0.0, %v759
    %v761 = vpop.f32.mrf.mxu0
    %762 = vmatprep.mubr.f32.mxu0 %v324
    %763 = vmatmul.mubr.f32.gmra.mxu0 %v323
    %v764 = vpop.f32.mrf.mxu0
    %v765 = vadd.f32 0.0, %v764
    %v766 = vpop.f32.mrf.mxu0
    %767 = vmatprep.mubr.f32.mxu0 %v326
    %768 = vmatmul.mubr.f32.gmra.mxu0 %v325
    %v769 = vpop.f32.mrf.mxu0
    %v770 = vadd.f32 0.0, %v769
    %v771 = vpop.f32.mrf.mxu0
    %772 = vmatprep.mubr.f32.mxu0 %v328
    %773 = vmatmul.mubr.f32.gmra.mxu0 %v327
    %v774 = vpop.f32.mrf.mxu0
    %v775 = vadd.f32 0.0, %v774
    %v776 = vpop.f32.mrf.mxu0
    %777 = vmatprep.mubr.f32.mxu0 %v330
    %778 = vmatmul.mubr.f32.gmra.mxu0 %v329
    %v779 = vpop.f32.mrf.mxu0
    %v780 = vadd.f32 0.0, %v779
    %v781 = vpop.f32.mrf.mxu0
    %782 = vmatprep.mubr.f32.mxu0 %v332
    %783 = vmatmul.mubr.f32.gmra.mxu0 %v331
    %v784 = vpop.f32.mrf.mxu0
    %v785 = vadd.f32 0.0, %v784
    %v786 = vpop.f32.mrf.mxu0
    %787 = vmatprep.mubr.f32.mxu0 %v334
    %788 = vmatmul.mubr.f32.gmra.mxu0 %v333
    %v789 = vpop.f32.mrf.mxu0
    %v790 = vadd.f32 0.0, %v789
    %v791 = vpop.f32.mrf.mxu0
    %792 = vmatprep.mubr.f32.mxu0 %v336
    %793 = vmatmul.mubr.f32.gmra.mxu0 %v335
    %v794 = vpop.f32.mrf.mxu0
    %v795 = vadd.f32 0.0, %v794
    %v796 = vpop.f32.mrf.mxu0
    %797 = vmatprep.mubr.f32.mxu0 %v338
    %798 = vmatmul.mubr.f32.gmra.mxu0 %v337
    %v799 = vpop.f32.mrf.mxu0
    %v800 = vadd.f32 0.0, %v799
    %v801 = vpop.f32.mrf.mxu0
    %802 = vmatprep.mubr.f32.mxu0 %v340
    %803 = vmatmul.mubr.f32.gmra.mxu0 %v339
    %v804 = vpop.f32.mrf.mxu0
    %v805 = vadd.f32 0.0, %v804
    %v806 = vpop.f32.mrf.mxu0
    %807 = vmatprep.mubr.f32.mxu0 %v342
    %808 = vmatmul.mubr.f32.gmra.mxu0 %v341
    %v809 = vpop.f32.mrf.mxu0
    %v810 = vadd.f32 0.0, %v809
    %v811 = vpop.f32.mrf.mxu0
    %812 = vmatprep.mubr.f32.mxu0 %v344
    %813 = vmatmul.mubr.f32.gmra.mxu0 %v343
    %v814 = vpop.f32.mrf.mxu0
    %v815 = vadd.f32 0.0, %v814
    %v816 = vpop.f32.mrf.mxu0
    %817 = vmatprep.mubr.f32.mxu0 %v346
    %818 = vmatmul.mubr.f32.gmra.mxu0 %v345
    %v819 = vpop.f32.mrf.mxu0
    %v820 = vadd.f32 0.0, %v819
    %v821 = vpop.f32.mrf.mxu0
    %822 = vmatprep.mubr.f32.mxu0 %v348
    %823 = vmatmul.mubr.f32.gmra.mxu0 %v347
    %v824 = vpop.f32.mrf.mxu0
    %v825 = vadd.f32 0.0, %v824
    %v826 = vpop.f32.mrf.mxu0
    %827 = vmatprep.mubr.f32.mxu0 %v350
    %828 = vmatmul.mubr.f32.gmra.mxu0 %v349
    %v829 = vpop.f32.mrf.mxu0
    %v830 = vadd.f32 0.0, %v829
    %v831 = vpop.f32.mrf.mxu0
    %832 = vdwg.mxu0
    %v833 = vadd.f32 %v544, %v675
    %v834 = vadd.f32 %v545, %v680
    %v835 = vadd.f32 %v546, %v685
    %v836 = vadd.f32 %v547, %v690
    %v837 = vadd.f32 %v548, %v695
    %v838 = vadd.f32 %v549, %v700
    %v839 = vadd.f32 %v550, %v705
    %v840 = vadd.f32 %v551, %v710
    %v841 = vadd.f32 %v552, %v715
    %v842 = vadd.f32 %v553, %v720
    %v843 = vadd.f32 %v554, %v725
    %v844 = vadd.f32 %v555, %v730
    %v845 = vadd.f32 %v556, %v735
    %v846 = vadd.f32 %v557, %v740
    %v847 = vadd.f32 %v558, %v745
    %v848 = vadd.f32 %v559, %v750
    %v849 = vadd.f32 %v560, %v755
    %v850 = vadd.f32 %v561, %v760
    %v851 = vadd.f32 %v562, %v765
    %v852 = vadd.f32 %v563, %v770
    %v853 = vadd.f32 %v564, %v775
    %v854 = vadd.f32 %v565, %v780
    %v855 = vadd.f32 %v566, %v785
    %v856 = vadd.f32 %v567, %v790
    %v857 = vadd.f32 %v568, %v795
    %v858 = vadd.f32 %v569, %v800
    %v859 = vadd.f32 %v570, %v805
    %v860 = vadd.f32 %v571, %v810
    %v861 = vadd.f32 %v572, %v815
    %v862 = vadd.f32 %v573, %v820
    %v863 = vadd.f32 %v574, %v825
    %v864 = vadd.f32 %v575, %v830
    %865 = vst [vmem:[#allocation2] sm:$0xff] %v833
    %866 = vst [vmem:[#allocation2 + $0x8] sm:$0xff] %v834
    %867 = vst [vmem:[#allocation2 + $0x10] sm:$0xff] %v835
    %868 = vst [vmem:[#allocation2 + $0x18] sm:$0xff] %v836
    %869 = vst [vmem:[#allocation2 + $0x20] sm:$0xff] %v837
    %870 = vst [vmem:[#allocation2 + $0x28] sm:$0xff] %v838
    %871 = vst [vmem:[#allocation2 + $0x30] sm:$0xff] %v839
    %872 = vst [vmem:[#allocation2 + $0x38] sm:$0xff] %v840
    %873 = vst [vmem:[#allocation2 + $0x40] sm:$0xff] %v841
    %874 = vst [vmem:[#allocation2 + $0x48] sm:$0xff] %v842
    %875 = vst [vmem:[#allocation2 + $0x50] sm:$0xff] %v843
    %876 = vst [vmem:[#allocation2 + $0x58] sm:$0xff] %v844
    %877 = vst [vmem:[#allocation2 + $0x60] sm:$0xff] %v845
    %878 = vst [vmem:[#allocation2 + $0x68] sm:$0xff] %v846
    %879 = vst [vmem:[#allocation2 + $0x70] sm:$0xff] %v847
    %880 = vst [vmem:[#allocation2 + $0x78] sm:$0xff] %v848
    %881 = vst [vmem:[#allocation2 + $0x80] sm:$0xff] %v849
    %882 = vst [vmem:[#allocation2 + $0x88] sm:$0xff] %v850
    %883 = vst [vmem:[#allocation2 + $0x90] sm:$0xff] %v851
    %884 = vst [vmem:[#allocation2 + $0x98] sm:$0xff] %v852
    %885 = vst [vmem:[#allocation2 + $0xa0] sm:$0xff] %v853
    %886 = vst [vmem:[#allocation2 + $0xa8] sm:$0xff] %v854
    %887 = vst [vmem:[#allocation2 + $0xb0] sm:$0xff] %v855
    %888 = vst [vmem:[#allocation2 + $0xb8] sm:$0xff] %v856
    %889 = vst [vmem:[#allocation2 + $0xc0] sm:$0xff] %v857
    %890 = vst [vmem:[#allocation2 + $0xc8] sm:$0xff] %v858
    %891 = vst [vmem:[#allocation2 + $0xd0] sm:$0xff] %v859
    %892 = vst [vmem:[#allocation2 + $0xd8] sm:$0xff] %v860
    %893 = vst [vmem:[#allocation2 + $0xe0] sm:$0xff] %v861
    %894 = vst [vmem:[#allocation2 + $0xe8] sm:$0xff] %v862
    %895 = vst [vmem:[#allocation2 + $0xf0] sm:$0xff] %v863
    %896 = vst [vmem:[#allocation2 + $0xf8] sm:$0xff] %v864
    // Predicated region
    $region18: #{tpu_custom_call.1} parent=1 // pred_check
      %p897 = pneg %p17
    $region19: #{tpu_custom_call.1} parent=1 // pred_check_branch
      %899 = sbr.rel (%p897) target = $region21
    $region20: #{tpu_custom_call.1} parent=1 // pred_region
      %v900 = vld [vmem:[#allocation2] sm:$0xff]
      %v901 = vld [vmem:[#allocation2 + $0x8] sm:$0xff]
      %v902 = vld [vmem:[#allocation2 + $0x10] sm:$0xff]
      %v903 = vld [vmem:[#allocation2 + $0x18] sm:$0xff]
      %v904 = vld [vmem:[#allocation2 + $0x20] sm:$0xff]
      %v905 = vld [vmem:[#allocation2 + $0x28] sm:$0xff]
      %v906 = vld [vmem:[#allocation2 + $0x30] sm:$0xff]
      %v907 = vld [vmem:[#allocation2 + $0x38] sm:$0xff]
      %v908 = vld [vmem:[#allocation2 + $0x40] sm:$0xff]
      %v909 = vld [vmem:[#allocation2 + $0x48] sm:$0xff]
      %v910 = vld [vmem:[#allocation2 + $0x50] sm:$0xff]
      %v911 = vld [vmem:[#allocation2 + $0x58] sm:$0xff]
      %v912 = vld [vmem:[#allocation2 + $0x60] sm:$0xff]
      %v913 = vld [vmem:[#allocation2 + $0x68] sm:$0xff]
      %v914 = vld [vmem:[#allocation2 + $0x70] sm:$0xff]
      %v915 = vld [vmem:[#allocation2 + $0x78] sm:$0xff]
      %v916 = vld [vmem:[#allocation2 + $0x80] sm:$0xff]
      %v917 = vld [vmem:[#allocation2 + $0x88] sm:$0xff]
      %v918 = vld [vmem:[#allocation2 + $0x90] sm:$0xff]
      %v919 = vld [vmem:[#allocation2 + $0x98] sm:$0xff]
      %v920 = vld [vmem:[#allocation2 + $0xa0] sm:$0xff]
      %v921 = vld [vmem:[#allocation2 + $0xa8] sm:$0xff]
      %v922 = vld [vmem:[#allocation2 + $0xb0] sm:$0xff]
      %v923 = vld [vmem:[#allocation2 + $0xb8] sm:$0xff]
      %v924 = vld [vmem:[#allocation2 + $0xc0] sm:$0xff]
      %v925 = vld [vmem:[#allocation2 + $0xc8] sm:$0xff]
      %v926 = vld [vmem:[#allocation2 + $0xd0] sm:$0xff]
      %v927 = vld [vmem:[#allocation2 + $0xd8] sm:$0xff]
      %v928 = vld [vmem:[#allocation2 + $0xe0] sm:$0xff]
      %v929 = vld [vmem:[#allocation2 + $0xe8] sm:$0xff]
      %v930 = vld [vmem:[#allocation2 + $0xf0] sm:$0xff]
      %v931 = vld [vmem:[#allocation2 + $0xf8] sm:$0xff]
      %v932 = vld [vmem:[#allocation3] sm:$0xff]
      %v933 = vld [vmem:[#allocation3 + $0x8] sm:$0xff]
      %v934 = vld [vmem:[#allocation3 + $0x10] sm:$0xff]
      %v935 = vld [vmem:[#allocation3 + $0x18] sm:$0xff]
      %v936 = vld [vmem:[#allocation3 + $0x20] sm:$0xff]
      %v937 = vld [vmem:[#allocation3 + $0x28] sm:$0xff]
      %v938 = vld [vmem:[#allocation3 + $0x30] sm:$0xff]
      %v939 = vld [vmem:[#allocation3 + $0x38] sm:$0xff]
      %v940 = vld [vmem:[#allocation3 + $0x40] sm:$0xff]
      %v941 = vld [vmem:[#allocation3 + $0x48] sm:$0xff]
      %v942 = vld [vmem:[#allocation3 + $0x50] sm:$0xff]
      %v943 = vld [vmem:[#allocation3 + $0x58] sm:$0xff]
      %v944 = vld [vmem:[#allocation3 + $0x60] sm:$0xff]
      %v945 = vld [vmem:[#allocation3 + $0x68] sm:$0xff]
      %v946 = vld [vmem:[#allocation3 + $0x70] sm:$0xff]
      %v947 = vld [vmem:[#allocation3 + $0x78] sm:$0xff]
      %v948 = vld [vmem:[#allocation3 + $0x80] sm:$0xff]
      %v949 = vld [vmem:[#allocation3 + $0x88] sm:$0xff]
      %v950 = vld [vmem:[#allocation3 + $0x90] sm:$0xff]
      %v951 = vld [vmem:[#allocation3 + $0x98] sm:$0xff]
      %v952 = vld [vmem:[#allocation3 + $0xa0] sm:$0xff]
      %v953 = vld [vmem:[#allocation3 + $0xa8] sm:$0xff]
      %v954 = vld [vmem:[#allocation3 + $0xb0] sm:$0xff]
      %v955 = vld [vmem:[#allocation3 + $0xb8] sm:$0xff]
      %v956 = vld [vmem:[#allocation3 + $0xc0] sm:$0xff]
      %v957 = vld [vmem:[#allocation3 + $0xc8] sm:$0xff]
      %v958 = vld [vmem:[#allocation3 + $0xd0] sm:$0xff]
      %v959 = vld [vmem:[#allocation3 + $0xd8] sm:$0xff]
      %v960 = vld [vmem:[#allocation3 + $0xe0] sm:$0xff]
      %v961 = vld [vmem:[#allocation3 + $0xe8] sm:$0xff]
      %v962 = vld [vmem:[#allocation3 + $0xf0] sm:$0xff]
      %v963 = vld [vmem:[#allocation3 + $0xf8] sm:$0xff]
      %v964 = vrcp.pop %v932
      %v965 = vmul.f32 1.0, %v964
      %v966 = vrcp.pop %v933
      %v967 = vmul.f32 1.0, %v966
      %v968 = vrcp.pop %v934
      %v969 = vmul.f32 1.0, %v968
      %v970 = vrcp.pop %v935
      %v971 = vmul.f32 1.0, %v970
      %v972 = vrcp.pop %v936
      %v973 = vmul.f32 1.0, %v972
      %v974 = vrcp.pop %v937
      %v975 = vmul.f32 1.0, %v974
      %v976 = vrcp.pop %v938
      %v977 = vmul.f32 1.0, %v976
      %v978 = vrcp.pop %v939
      %v979 = vmul.f32 1.0, %v978
      %v980 = vrcp.pop %v940
      %v981 = vmul.f32 1.0, %v980
      %v982 = vrcp.pop %v941
      %v983 = vmul.f32 1.0, %v982
      %v984 = vrcp.pop %v942
      %v985 = vmul.f32 1.0, %v984
      %v986 = vrcp.pop %v943
      %v987 = vmul.f32 1.0, %v986
      %v988 = vrcp.pop %v944
      %v989 = vmul.f32 1.0, %v988
      %v990 = vrcp.pop %v945
      %v991 = vmul.f32 1.0, %v990
      %v992 = vrcp.pop %v946
      %v993 = vmul.f32 1.0, %v992
      %v994 = vrcp.pop %v947
      %v995 = vmul.f32 1.0, %v994
      %v996 = vrcp.pop %v948
      %v997 = vmul.f32 1.0, %v996
      %v998 = vrcp.pop %v949
      %v999 = vmul.f32 1.0, %v998
      %v1000 = vrcp.pop %v950
      %v1001 = vmul.f32 1.0, %v1000
      %v1002 = vrcp.pop %v951
      %v1003 = vmul.f32 1.0, %v1002
      %v1004 = vrcp.pop %v952
      %v1005 = vmul.f32 1.0, %v1004
      %v1006 = vrcp.pop %v953
      %v1007 = vmul.f32 1.0, %v1006
      %v1008 = vrcp.pop %v954
      %v1009 = vmul.f32 1.0, %v1008
      %v1010 = vrcp.pop %v955
      %v1011 = vmul.f32 1.0, %v1010
      %v1012 = vrcp.pop %v956
      %v1013 = vmul.f32 1.0, %v1012
      %v1014 = vrcp.pop %v957
      %v1015 = vmul.f32 1.0, %v1014
      %v1016 = vrcp.pop %v958
      %v1017 = vmul.f32 1.0, %v1016
      %v1018 = vrcp.pop %v959
      %v1019 = vmul.f32 1.0, %v1018
      %v1020 = vrcp.pop %v960
      %v1021 = vmul.f32 1.0, %v1020
      %v1022 = vrcp.pop %v961
      %v1023 = vmul.f32 1.0, %v1022
      %v1024 = vrcp.pop %v962
      %v1025 = vmul.f32 1.0, %v1024
      %v1026 = vrcp.pop %v963
      %v1027 = vmul.f32 1.0, %v1026
      %1029 = vset.pattern.permute.xlu0 0
      %1030 = vperm.xlu0 %1029, %v965
      %v1031 = vpop.permute.xlu0 %1030
      %1034 = vset.pattern.permute.xlu0 0
      %1035 = vperm.xlu0 %1034, %v967
      %v1036 = vpop.permute.xlu0 %1035
      %1039 = vset.pattern.permute.xlu0 0
      %1040 = vperm.xlu0 %1039, %v969
      %v1041 = vpop.permute.xlu0 %1040
      %1044 = vset.pattern.permute.xlu0 0
      %1045 = vperm.xlu0 %1044, %v971
      %v1046 = vpop.permute.xlu0 %1045
      %1049 = vset.pattern.permute.xlu0 0
      %1050 = vperm.xlu0 %1049, %v973
      %v1051 = vpop.permute.xlu0 %1050
      %1054 = vset.pattern.permute.xlu0 0
      %1055 = vperm.xlu0 %1054, %v975
      %v1056 = vpop.permute.xlu0 %1055
      %1059 = vset.pattern.permute.xlu0 0
      %1060 = vperm.xlu0 %1059, %v977
      %v1061 = vpop.permute.xlu0 %1060
      %1064 = vset.pattern.permute.xlu0 0
      %1065 = vperm.xlu0 %1064, %v979
      %v1066 = vpop.permute.xlu0 %1065
      %1069 = vset.pattern.permute.xlu0 0
      %1070 = vperm.xlu0 %1069, %v981
      %v1071 = vpop.permute.xlu0 %1070
      %1074 = vset.pattern.permute.xlu0 0
      %1075 = vperm.xlu0 %1074, %v983
      %v1076 = vpop.permute.xlu0 %1075
      %1079 = vset.pattern.permute.xlu0 0
      %1080 = vperm.xlu0 %1079, %v985
      %v1081 = vpop.permute.xlu0 %1080
      %1084 = vset.pattern.permute.xlu0 0
      %1085 = vperm.xlu0 %1084, %v987
      %v1086 = vpop.permute.xlu0 %1085
      %1089 = vset.pattern.permute.xlu0 0
      %1090 = vperm.xlu0 %1089, %v989
      %v1091 = vpop.permute.xlu0 %1090
      %1094 = vset.pattern.permute.xlu0 0
      %1095 = vperm.xlu0 %1094, %v991
      %v1096 = vpop.permute.xlu0 %1095
      %1099 = vset.pattern.permute.xlu0 0
      %1100 = vperm.xlu0 %1099, %v993
      %v1101 = vpop.permute.xlu0 %1100
      %1104 = vset.pattern.permute.xlu0 0
      %1105 = vperm.xlu0 %1104, %v995
      %v1106 = vpop.permute.xlu0 %1105
      %1109 = vset.pattern.permute.xlu0 0
      %1110 = vperm.xlu0 %1109, %v997
      %v1111 = vpop.permute.xlu0 %1110
      %1114 = vset.pattern.permute.xlu0 0
      %1115 = vperm.xlu0 %1114, %v999
      %v1116 = vpop.permute.xlu0 %1115
      %1119 = vset.pattern.permute.xlu0 0
      %1120 = vperm.xlu0 %1119, %v1001
      %v1121 = vpop.permute.xlu0 %1120
      %1124 = vset.pattern.permute.xlu0 0
      %1125 = vperm.xlu0 %1124, %v1003
      %v1126 = vpop.permute.xlu0 %1125
      %1129 = vset.pattern.permute.xlu0 0
      %1130 = vperm.xlu0 %1129, %v1005
      %v1131 = vpop.permute.xlu0 %1130
      %1134 = vset.pattern.permute.xlu0 0
      %1135 = vperm.xlu0 %1134, %v1007
      %v1136 = vpop.permute.xlu0 %1135
      %1139 = vset.pattern.permute.xlu0 0
      %1140 = vperm.xlu0 %1139, %v1009
      %v1141 = vpop.permute.xlu0 %1140
      %1144 = vset.pattern.permute.xlu0 0
      %1145 = vperm.xlu0 %1144, %v1011
      %v1146 = vpop.permute.xlu0 %1145
      %1149 = vset.pattern.permute.xlu0 0
      %1150 = vperm.xlu0 %1149, %v1013
      %v1151 = vpop.permute.xlu0 %1150
      %1154 = vset.pattern.permute.xlu0 0
      %1155 = vperm.xlu0 %1154, %v1015
      %v1156 = vpop.permute.xlu0 %1155
      %1159 = vset.pattern.permute.xlu0 0
      %1160 = vperm.xlu0 %1159, %v1017
      %v1161 = vpop.permute.xlu0 %1160
      %1164 = vset.pattern.permute.xlu0 0
      %1165 = vperm.xlu0 %1164, %v1019
      %v1166 = vpop.permute.xlu0 %1165
      %1169 = vset.pattern.permute.xlu0 0
      %1170 = vperm.xlu0 %1169, %v1021
      %v1171 = vpop.permute.xlu0 %1170
      %1174 = vset.pattern.permute.xlu0 0
      %1175 = vperm.xlu0 %1174, %v1023
      %v1176 = vpop.permute.xlu0 %1175
      %1179 = vset.pattern.permute.xlu0 0
      %1180 = vperm.xlu0 %1179, %v1025
      %v1181 = vpop.permute.xlu0 %1180
      %1184 = vset.pattern.permute.xlu0 0
      %1185 = vperm.xlu0 %1184, %v1027
      %v1186 = vpop.permute.xlu0 %1185
      %v1188 = vmul.f32 %v900, %v1031
      %v1189 = vmul.f32 %v901, %v1036
      %v1190 = vmul.f32 %v902, %v1041
      %v1191 = vmul.f32 %v903, %v1046
      %v1192 = vmul.f32 %v904, %v1051
      %v1193 = vmul.f32 %v905, %v1056
      %v1194 = vmul.f32 %v906, %v1061
      %v1195 = vmul.f32 %v907, %v1066
      %v1196 = vmul.f32 %v908, %v1071
      %v1197 = vmul.f32 %v909, %v1076
      %v1198 = vmul.f32 %v910, %v1081
      %v1199 = vmul.f32 %v911, %v1086
      %v1200 = vmul.f32 %v912, %v1091
      %v1201 = vmul.f32 %v913, %v1096
      %v1202 = vmul.f32 %v914, %v1101
      %v1203 = vmul.f32 %v915, %v1106
      %v1204 = vmul.f32 %v916, %v1111
      %v1205 = vmul.f32 %v917, %v1116
      %v1206 = vmul.f32 %v918, %v1121
      %v1207 = vmul.f32 %v919, %v1126
      %v1208 = vmul.f32 %v920, %v1131
      %v1209 = vmul.f32 %v921, %v1136
      %v1210 = vmul.f32 %v922, %v1141
      %v1211 = vmul.f32 %v923, %v1146
      %v1212 = vmul.f32 %v924, %v1151
      %v1213 = vmul.f32 %v925, %v1156
      %v1214 = vmul.f32 %v926, %v1161
      %v1215 = vmul.f32 %v927, %v1166
      %v1216 = vmul.f32 %v928, %v1171
      %v1217 = vmul.f32 %v929, %v1176
      %v1218 = vmul.f32 %v930, %v1181
      %v1219 = vmul.f32 %v931, %v1186
      %v1220 = vmul.f32 %v1188, %v1188
      %v1221 = vmul.f32 %v1189, %v1189
      %v1222 = vmul.f32 %v1190, %v1190
      %v1223 = vmul.f32 %v1191, %v1191
      %v1224 = vmul.f32 %v1192, %v1192
      %v1225 = vmul.f32 %v1193, %v1193
      %v1226 = vmul.f32 %v1194, %v1194
      %v1227 = vmul.f32 %v1195, %v1195
      %v1228 = vmul.f32 %v1196, %v1196
      %v1229 = vmul.f32 %v1197, %v1197
      %v1230 = vmul.f32 %v1198, %v1198
      %v1231 = vmul.f32 %v1199, %v1199
      %v1232 = vmul.f32 %v1200, %v1200
      %v1233 = vmul.f32 %v1201, %v1201
      %v1234 = vmul.f32 %v1202, %v1202
      %v1235 = vmul.f32 %v1203, %v1203
      %v1236 = vmul.f32 %v1204, %v1204
      %v1237 = vmul.f32 %v1205, %v1205
      %v1238 = vmul.f32 %v1206, %v1206
      %v1239 = vmul.f32 %v1207, %v1207
      %v1240 = vmul.f32 %v1208, %v1208
      %v1241 = vmul.f32 %v1209, %v1209
      %v1242 = vmul.f32 %v1210, %v1210
      %v1243 = vmul.f32 %v1211, %v1211
      %v1244 = vmul.f32 %v1212, %v1212
      %v1245 = vmul.f32 %v1213, %v1213
      %v1246 = vmul.f32 %v1214, %v1214
      %v1247 = vmul.f32 %v1215, %v1215
      %v1248 = vmul.f32 %v1216, %v1216
      %v1249 = vmul.f32 %v1217, %v1217
      %v1250 = vmul.f32 %v1218, %v1218
      %v1251 = vmul.f32 %v1219, %v1219
      %1252 = vadd.xlane.f32.xlu0 %v1220
      %v1253 = vpop.xlane.xlu0 %1252
      %1254 = vadd.xlane.f32.xlu0 %v1221
      %v1255 = vpop.xlane.xlu0 %1254
      %1256 = vadd.xlane.f32.xlu0 %v1222
      %v1257 = vpop.xlane.xlu0 %1256
      %1258 = vadd.xlane.f32.xlu0 %v1223
      %v1259 = vpop.xlane.xlu0 %1258
      %1260 = vadd.xlane.f32.xlu0 %v1224
      %v1261 = vpop.xlane.xlu0 %1260
      %1262 = vadd.xlane.f32.xlu0 %v1225
      %v1263 = vpop.xlane.xlu0 %1262
      %1264 = vadd.xlane.f32.xlu0 %v1226
      %v1265 = vpop.xlane.xlu0 %1264
      %1266 = vadd.xlane.f32.xlu0 %v1227
      %v1267 = vpop.xlane.xlu0 %1266
      %1268 = vadd.xlane.f32.xlu0 %v1228
      %v1269 = vpop.xlane.xlu0 %1268
      %1270 = vadd.xlane.f32.xlu0 %v1229
      %v1271 = vpop.xlane.xlu0 %1270
      %1272 = vadd.xlane.f32.xlu0 %v1230
      %v1273 = vpop.xlane.xlu0 %1272
      %1274 = vadd.xlane.f32.xlu0 %v1231
      %v1275 = vpop.xlane.xlu0 %1274
      %1276 = vadd.xlane.f32.xlu0 %v1232
      %v1277 = vpop.xlane.xlu0 %1276
      %1278 = vadd.xlane.f32.xlu0 %v1233
      %v1279 = vpop.xlane.xlu0 %1278
      %1280 = vadd.xlane.f32.xlu0 %v1234
      %v1281 = vpop.xlane.xlu0 %1280
      %1282 = vadd.xlane.f32.xlu0 %v1235
      %v1283 = vpop.xlane.xlu0 %1282
      %1284 = vadd.xlane.f32.xlu0 %v1236
      %v1285 = vpop.xlane.xlu0 %1284
      %1286 = vadd.xlane.f32.xlu0 %v1237
      %v1287 = vpop.xlane.xlu0 %1286
      %1288 = vadd.xlane.f32.xlu0 %v1238
      %v1289 = vpop.xlane.xlu0 %1288
      %1290 = vadd.xlane.f32.xlu0 %v1239
      %v1291 = vpop.xlane.xlu0 %1290
      %1292 = vadd.xlane.f32.xlu0 %v1240
      %v1293 = vpop.xlane.xlu0 %1292
      %1294 = vadd.xlane.f32.xlu0 %v1241
      %v1295 = vpop.xlane.xlu0 %1294
      %1296 = vadd.xlane.f32.xlu0 %v1242
      %v1297 = vpop.xlane.xlu0 %1296
      %1298 = vadd.xlane.f32.xlu0 %v1243
      %v1299 = vpop.xlane.xlu0 %1298
      %1300 = vadd.xlane.f32.xlu0 %v1244
      %v1301 = vpop.xlane.xlu0 %1300
      %1302 = vadd.xlane.f32.xlu0 %v1245
      %v1303 = vpop.xlane.xlu0 %1302
      %1304 = vadd.xlane.f32.xlu0 %v1246
      %v1305 = vpop.xlane.xlu0 %1304
      %1306 = vadd.xlane.f32.xlu0 %v1247
      %v1307 = vpop.xlane.xlu0 %1306
      %1308 = vadd.xlane.f32.xlu0 %v1248
      %v1309 = vpop.xlane.xlu0 %1308
      %1310 = vadd.xlane.f32.xlu0 %v1249
      %v1311 = vpop.xlane.xlu0 %1310
      %1312 = vadd.xlane.f32.xlu0 %v1250
      %v1313 = vpop.xlane.xlu0 %1312
      %1314 = vadd.xlane.f32.xlu0 %v1251
      %v1315 = vpop.xlane.xlu0 %1314
      %1316 = vst.msk [vmem:[%s4] sm:$0xff] %vm511, %v1253
      %1317 = vst.msk [vmem:[%s4 + $0x8] sm:$0xff] %vm511, %v1255
      %1318 = vst.msk [vmem:[%s4 + $0x10] sm:$0xff] %vm511, %v1257
      %1319 = vst.msk [vmem:[%s4 + $0x18] sm:$0xff] %vm511, %v1259
      %1320 = vst.msk [vmem:[%s4 + $0x20] sm:$0xff] %vm511, %v1261
      %1321 = vst.msk [vmem:[%s4 + $0x28] sm:$0xff] %vm511, %v1263
      %1322 = vst.msk [vmem:[%s4 + $0x30] sm:$0xff] %vm511, %v1265
      %1323 = vst.msk [vmem:[%s4 + $0x38] sm:$0xff] %vm511, %v1267
      %1324 = vst.msk [vmem:[%s4 + $0x40] sm:$0xff] %vm511, %v1269
      %1325 = vst.msk [vmem:[%s4 + $0x48] sm:$0xff] %vm511, %v1271
      %1326 = vst.msk [vmem:[%s4 + $0x50] sm:$0xff] %vm511, %v1273
      %1327 = vst.msk [vmem:[%s4 + $0x58] sm:$0xff] %vm511, %v1275
      %1328 = vst.msk [vmem:[%s4 + $0x60] sm:$0xff] %vm511, %v1277
      %1329 = vst.msk [vmem:[%s4 + $0x68] sm:$0xff] %vm511, %v1279
      %1330 = vst.msk [vmem:[%s4 + $0x70] sm:$0xff] %vm511, %v1281
      %1331 = vst.msk [vmem:[%s4 + $0x78] sm:$0xff] %vm511, %v1283
      %1332 = vst.msk [vmem:[%s4 + $0x80] sm:$0xff] %vm511, %v1285
      %1333 = vst.msk [vmem:[%s4 + $0x88] sm:$0xff] %vm511, %v1287
      %1334 = vst.msk [vmem:[%s4 + $0x90] sm:$0xff] %vm511, %v1289
      %1335 = vst.msk [vmem:[%s4 + $0x98] sm:$0xff] %vm511, %v1291
      %1336 = vst.msk [vmem:[%s4 + $0xa0] sm:$0xff] %vm511, %v1293
      %1337 = vst.msk [vmem:[%s4 + $0xa8] sm:$0xff] %vm511, %v1295
      %1338 = vst.msk [vmem:[%s4 + $0xb0] sm:$0xff] %vm511, %v1297
      %1339 = vst.msk [vmem:[%s4 + $0xb8] sm:$0xff] %vm511, %v1299
      %1340 = vst.msk [vmem:[%s4 + $0xc0] sm:$0xff] %vm511, %v1301
      %1341 = vst.msk [vmem:[%s4 + $0xc8] sm:$0xff] %vm511, %v1303
      %1342 = vst.msk [vmem:[%s4 + $0xd0] sm:$0xff] %vm511, %v1305
      %1343 = vst.msk [vmem:[%s4 + $0xd8] sm:$0xff] %vm511, %v1307
      %1344 = vst.msk [vmem:[%s4 + $0xe0] sm:$0xff] %vm511, %v1309
      %1345 = vst.msk [vmem:[%s4 + $0xe8] sm:$0xff] %vm511, %v1311
      %1346 = vst.msk [vmem:[%s4 + $0xf0] sm:$0xff] %vm511, %v1313
      %1347 = vst.msk [vmem:[%s4 + $0xf8] sm:$0xff] %vm511, %v1315
      %1348 = vst [vmem:[#allocation4] sm:$0xff] %v1188
      %1349 = vst [vmem:[#allocation4 + $0x8] sm:$0xff] %v1189
      %1350 = vst [vmem:[#allocation4 + $0x10] sm:$0xff] %v1190
      %1351 = vst [vmem:[#allocation4 + $0x18] sm:$0xff] %v1191
      %1352 = vst [vmem:[#allocation4 + $0x20] sm:$0xff] %v1192
      %1353 = vst [vmem:[#allocation4 + $0x28] sm:$0xff] %v1193
      %1354 = vst [vmem:[#allocation4 + $0x30] sm:$0xff] %v1194
      %1355 = vst [vmem:[#allocation4 + $0x38] sm:$0xff] %v1195
      %1356 = vst [vmem:[#allocation4 + $0x40] sm:$0xff] %v1196
      %1357 = vst [vmem:[#allocation4 + $0x48] sm:$0xff] %v1197
      %1358 = vst [vmem:[#allocation4 + $0x50] sm:$0xff] %v1198
      %1359 = vst [vmem:[#allocation4 + $0x58] sm:$0xff] %v1199
      %1360 = vst [vmem:[#allocation4 + $0x60] sm:$0xff] %v1200
      %1361 = vst [vmem:[#allocation4 + $0x68] sm:$0xff] %v1201
      %1362 = vst [vmem:[#allocation4 + $0x70] sm:$0xff] %v1202
      %1363 = vst [vmem:[#allocation4 + $0x78] sm:$0xff] %v1203
      %1364 = vst [vmem:[#allocation4 + $0x80] sm:$0xff] %v1204
      %1365 = vst [vmem:[#allocation4 + $0x88] sm:$0xff] %v1205
      %1366 = vst [vmem:[#allocation4 + $0x90] sm:$0xff] %v1206
      %1367 = vst [vmem:[#allocation4 + $0x98] sm:$0xff] %v1207
      %1368 = vst [vmem:[#allocation4 + $0xa0] sm:$0xff] %v1208
      %1369 = vst [vmem:[#allocation4 + $0xa8] sm:$0xff] %v1209
      %1370 = vst [vmem:[#allocation4 + $0xb0] sm:$0xff] %v1210
      %1371 = vst [vmem:[#allocation4 + $0xb8] sm:$0xff] %v1211
      %1372 = vst [vmem:[#allocation4 + $0xc0] sm:$0xff] %v1212
      %1373 = vst [vmem:[#allocation4 + $0xc8] sm:$0xff] %v1213
      %1374 = vst [vmem:[#allocation4 + $0xd0] sm:$0xff] %v1214
      %1375 = vst [vmem:[#allocation4 + $0xd8] sm:$0xff] %v1215
      %1376 = vst [vmem:[#allocation4 + $0xe0] sm:$0xff] %v1216
      %1377 = vst [vmem:[#allocation4 + $0xe8] sm:$0xff] %v1217
      %1378 = vst [vmem:[#allocation4 + $0xf0] sm:$0xff] %v1218
      %1379 = vst [vmem:[#allocation4 + $0xf8] sm:$0xff] %v1219
    $region21: #{tpu_custom_call.1} parent=1 // pred_fallthru
      _
    // Predicated region
    $region22: #{tpu_custom_call.1} parent=1 // pred_check
      _
    $region23: #{tpu_custom_call.1} parent=1 // pred_check_branch
      %1381 = sbr.rel (0) target = $region25
    $region24: #{tpu_custom_call.1} parent=1 // pred_region
      %s1383 = ssub.s32 4096, 4096
      %1384 = vsyncadd [#allocation5], %s1383
      %s1385 = sshll.u32 [#allocation4], 4
      %s1386 = int_to_ptr.vmem [resolvable:$true] %s1385
      %1391 = dma.vmem_to_hbm [thread:$0]  %s1386, 4096, %s3, [#allocation5], 128, 128, 8
    $region25: #{tpu_custom_call.1} parent=1 // pred_fallthru
      _
    // Predicated region
    $region26: #{tpu_custom_call.1} parent=1 // pred_check
      _
    $region27: #{tpu_custom_call.1} parent=1 // pred_check_branch
      %1393 = sbr.rel (0) target = $region29
    $region28: #{tpu_custom_call.1} parent=1 // pred_region
      _
    $region29: #{tpu_custom_call.1} parent=1 // pred_fallthru
      _
    // Predicated region
    $region30: #{tpu_custom_call.1} parent=1 // pred_check
      _
    $region31: #{tpu_custom_call.1} parent=1 // pred_check_branch
      %1395 = sbr.rel (0) target = $region33
    $region32: #{tpu_custom_call.1} parent=1 // pred_region
      %1396 = dma.done [#allocation5], 4096
    $region33: #{tpu_custom_call.1} parent=1 // pred_fallthru
      _
    // Predicated region
    $region34: #{tpu_custom_call.1} parent=1 // pred_check
      _
    $region35: #{tpu_custom_call.1} parent=1 // pred_check_branch
      %1398 = sbr.rel (0) target = $region37
    $region36: #{tpu_custom_call.1} parent=1 // pred_region
      _
    $region37: #{tpu_custom_call.1} parent=1 // pred_fallthru
      _
    %1399 = vsyncpa [#allocation5], 1

</llo_original>
